<compile_context>
chip_gen: v6e
topology: v6e:2x2x1
jax: 0.10.0
libtpu: 0.0.40
codegen_flags: <defaults>
</compile_context>

<pallas_src>
import functools

import jax
import jax.numpy as jnp
from jax import lax
from jax.experimental import pallas as pl
from jax.experimental.pallas import tpu as pltpu


def _round_up(x, m):
    return (x + m - 1) // m * m


# --------------------------------------------------------------------------
# Pallas kernel: SharedMLP + max-pool over nsample, one (batch, P-tile) per
# grid step.  Input block (1, 1, Cin_pad, S*TILE_P) bf16, output block
# (1, Cout_pad, TILE_P) f32 (lane-dense, channels-first like PyTorch).
# --------------------------------------------------------------------------
def _sa_mlp_maxpool_kernel(*refs, num_layers, nsample, tile_p):
    x_ref = refs[0]
    o_ref = refs[-1]
    param_refs = refs[1:-1]

    h = x_ref[0, 0]                               # (Cin_pad, S*TILE_P) bf16
    for l in range(num_layers):
        w = param_refs[2 * l][...]                # (Co_p, Ci_p) bf16
        b = param_refs[2 * l + 1][...]            # (Co_p, 1)   f32
        acc = jnp.dot(w, h, preferred_element_type=jnp.float32)   # one big MXU matmul
        acc = jnp.maximum(acc + b, 0.0)           # Conv2d(1x1) bias + ReLU, f32
        h = acc.astype(jnp.bfloat16) if l < num_layers - 1 else acc

    # Max-pool over nsample: aligned static lane slices (no relayout), VPU max.
    out = h[:, 0:tile_p]
    for s in range(1, nsample):
        out = jnp.maximum(out, h[:, s * tile_p:(s + 1) * tile_p])
    o_ref[0] = out.astype(o_ref.dtype)            # (Cout_pad, TILE_P), lane-dense store


def sa_mlp_maxpool(grouped, weights, biases, *, max_tile_p=512):
    """grouped: (B, P, S, Cin) f32
       weights[l]: (C_l, C_{l+1}),  biases[l]: (C_{l+1},)
       returns (B, C_last, P) f32  (channels-first, matches PyTorch SharedMLP+pool)."""
    B, P, S, Cin = grouped.shape
    num_layers = len(weights)
    cout = weights[-1].shape[1]

    # ---- pad channel dims to multiples of 8 sublanes, transpose weights ----
    cin_pad = _round_up(Cin, 8)
    chan = [cin_pad] + [_round_up(w.shape[1], 8) for w in weights]
    wts, bss = [], []
    for l, (w, b) in enumerate(zip(weights, biases)):
        ci, co = w.shape
        ci_p, co_p = chan[l], chan[l + 1]
        w_p = jnp.zeros((co_p, ci_p), jnp.bfloat16).at[:co, :ci].set(
            w.T.astype(jnp.bfloat16))
        b_p = jnp.zeros((co_p, 1), jnp.float32).at[:co, 0].set(
            b.astype(jnp.float32))
        wts.append(w_p)
        bss.append(b_p)
    cout_pad = chan[-1]

    # ---- pad npoint to a multiple of 128 and pick the lane tile ----
    P_pad = _round_up(P, 128)
    tile_p = 128
    for cand in (max_tile_p, 512, 256, 128):
        if (cand % 128 == 0 and P_pad % cand == 0
                and S * cin_pad * cand * 2 <= (2 << 20)       # input block bf16
                and S * max(chan) * cand * 4 <= (8 << 20)):   # biggest f32 activation
            tile_p = cand
            break
    n_tiles = P_pad // tile_p

    # ---- repack: channels on sublanes, (nsample x points) merged on lanes ----
    g = jnp.pad(grouped, ((0, 0), (0, P_pad - P), (0, 0), (0, cin_pad - Cin)))
    g = g.astype(jnp.bfloat16)
    g = g.reshape(B, n_tiles, tile_p, S, cin_pad)
    g = jnp.transpose(g, (0, 1, 4, 3, 2))          # (B, nt, Cin_pad, S, TILE_P)
    g = g.reshape(B, n_tiles, cin_pad, S * tile_p)

    grid = (B, n_tiles)
    in_specs = [pl.BlockSpec((1, 1, cin_pad, S * tile_p),
                             lambda b, pt: (b, pt, 0, 0))]
    params = []
    for w_p, b_p in zip(wts, bss):
        in_specs.append(pl.BlockSpec(w_p.shape, lambda b, pt: (0, 0)))
        in_specs.append(pl.BlockSpec(b_p.shape, lambda b, pt: (0, 0)))
        params.append(w_p)
        params.append(b_p)

    # ---- explicit scoped-VMEM budget: buffered tiles + activations + params ----
    block_in = S * cin_pad * tile_p * 2
    block_out = cout_pad * tile_p * 4
    act_bytes = S * max(chan) * tile_p * 6        # f32 acc + bf16 copy, per layer
    param_bytes = sum(int(w.size) * 2 + int(b.size) * 4 for w, b in zip(wts, bss))
    needed = 2 * (block_in + block_out) + num_layers * act_bytes + param_bytes
    vmem_limit = int(min(max(4 * needed, 16 * 2**20), 64 * 2**20))

    kernel = functools.partial(_sa_mlp_maxpool_kernel,
                               num_layers=num_layers, nsample=S, tile_p=tile_p)
    out = pl.pallas_call(
        kernel,
        out_shape=jax.ShapeDtypeStruct((B, cout_pad, P_pad), jnp.float32),
        grid_spec=pltpu.PrefetchScalarGridSpec(
            num_scalar_prefetch=0,
            grid=grid,
            in_specs=in_specs,
            out_specs=pl.BlockSpec((1, cout_pad, tile_p), lambda b, pt: (b, 0, pt)),
        ),
        compiler_params=pltpu.CompilerParams(
            dimension_semantics=("parallel", "parallel"),
            vmem_limit_bytes=vmem_limit),
    )(g, *params)
    return out[:, :cout, :P]


# --------------------------------------------------------------------------
# Plain-JAX glue: furthest point sampling, gathering, grouping.
# --------------------------------------------------------------------------
def furthest_point_sampling(xyz, npoint):
    """xyz: (B, N, 3) -> (B, npoint) int32.  Sequential like pointops."""
    B, N, _ = xyz.shape

    def per_batch(pts):
        def body(i, state):
            idxs, dists, last = state
            d = jnp.sum((pts - pts[last]) ** 2, axis=-1)
            dists = jnp.minimum(dists, d)
            nxt = jnp.argmax(dists).astype(jnp.int32)
            return idxs.at[i].set(nxt), dists, nxt

        idxs0 = jnp.zeros((npoint,), jnp.int32)
        dists0 = jnp.full((N,), jnp.float32(1e10))
        idxs, _, _ = lax.fori_loop(1, npoint, body, (idxs0, dists0, jnp.int32(0)))
        return idxs

    return jax.vmap(per_batch)(xyz)


def knn_group(xyz, new_xyz, features, nsample, use_xyz=True):
    """Deterministic kNN grouper (stand-in for ball-query QueryAndGroup).
    xyz: (B, N, 3), new_xyz: (B, npoint, 3), features: (B, C, N)
    returns (B, npoint, nsample, 3 + C) channels-last."""
    d2 = jnp.sum((new_xyz[:, :, None, :] - xyz[:, None, :, :]) ** 2, axis=-1)
    _, idx = lax.top_k(-d2, nsample)                       # (B, npoint, nsample)

    def gather(pts, ind):                                  # pts (N, D), ind (P, S)
        return pts[ind]

    grouped_xyz = jax.vmap(gather)(xyz, idx)               # (B, P, S, 3)
    grouped_xyz = grouped_xyz - new_xyz[:, :, None, :]     # relative coords
    feats_nlast = jnp.transpose(features, (0, 2, 1))       # (B, N, C)
    grouped_feat = jax.vmap(gather)(feats_nlast, idx)      # (B, P, S, C)
    if use_xyz:
        return jnp.concatenate([grouped_xyz, grouped_feat], axis=-1)
    return grouped_feat


def pointnet_sa_forward(xyz, features, npoint, nsamples, mlps_w, mlps_b):
    """Mirrors _PointnetSAModuleBase.forward.
    xyz: (B, N, 3), features: (B, C, N)
    returns new_xyz (B, npoint, 3), new_features (B, sum(mlp[-1]), npoint)."""
    center_idx = furthest_point_sampling(xyz, npoint)
    new_xyz = jnp.take_along_axis(xyz, center_idx[..., None], axis=1)

    new_features_list = []
    for nsample, ws, bs in zip(nsamples, mlps_w, mlps_b):
        grouped = knn_group(xyz, new_xyz, features, nsample)       # (B, P, S, 3+C)
        new_features_list.append(sa_mlp_maxpool(grouped, ws, bs))  # (B, Cout, P)
    return new_xyz, jnp.concatenate(new_features_list, axis=1)


# --------------------------------------------------------------------------
# Pure-JAX reference for the Pallas hot path (same bf16-in / f32-accumulate
# numerics as the kernel) for a correctness check.
# --------------------------------------------------------------------------
def _ref_mlp_maxpool(grouped, ws, bs):
    h = grouped.astype(jnp.bfloat16)
    L = len(ws)
    for l, (w, b) in enumerate(zip(ws, bs)):
        d = jnp.einsum('bpsc,cd->bpsd', h, w.astype(jnp.bfloat16),
                       preferred_element_type=jnp.float32)
        hf = jnp.maximum(d + b, 0.0)
        h = hf.astype(jnp.bfloat16) if l < L - 1 else hf
    return jnp.max(h, axis=2)                               # (B, P, Cout) f32


if __name__ == "__main__":
    key = jax.random.PRNGKey(0)
    B, N, C = 2, 1024, 4
    npoint = 512
    nsamples = [8, 16]                                      # two groupers
    mlp_channels = [[3 + C, 16, 32], [3 + C, 16, 32]]

    k_xyz, k_feat, k_w = jax.random.split(key, 3)
    xyz = jax.random.normal(k_xyz, (B, N, 3), jnp.float32)
    features = jax.random.normal(k_feat, (B, C, N), jnp.float32)

    mlps_w, mlps_b = [], []
    for chans in mlp_channels:
        ws, bs = [], []
        for l in range(len(chans) - 1):
            k_w, kw, kb = jax.random.split(k_w, 3)
            cin, cout = chans[l], chans[l + 1]
            ws.append(jax.random.normal(kw, (cin, cout), jnp.float32)
                      * (1.0 / jnp.sqrt(cin)))
            bs.append(jax.random.normal(kb, (cout,), jnp.float32) * 0.01)
        mlps_w.append(ws)
        mlps_b.append(bs)

    new_xyz, new_features = pointnet_sa_forward(
        xyz, features, npoint, nsamples, mlps_w, mlps_b)
    jax.block_until_ready((new_xyz, new_features))

    assert new_xyz.shape == (B, npoint, 3)
    assert new_features.shape == (B, sum(c[-1] for c in mlp_channels), npoint)

    # Check the Pallas hot path against a pure-JAX reference (same numerics).
    refs = []
    for nsample, ws, bs in zip(nsamples, mlps_w, mlps_b):
        grouped = knn_group(xyz, new_xyz, features, nsample)
        refs.append(jnp.transpose(_ref_mlp_maxpool(grouped, ws, bs), (0, 2, 1)))
    ref_out = jnp.concatenate(refs, axis=1)
    assert jnp.allclose(new_features, ref_out, rtol=1e-2, atol=1e-2), (
        float(jnp.max(jnp.abs(new_features - ref_out))))

    print("KERNEL_OK")
</pallas_src>

<mosaic_0001>
module attributes {stable_mosaic.version = 11 : i64} {
  func.func @_sa_mlp_maxpool_kernel(%arg0: i32, %arg1: i32, %arg2: memref<1x1x8x4096xbf16, #tpu.memory_space<vmem>>, %arg3: memref<16x8xbf16, #tpu.memory_space<vmem>>, %arg4: memref<16x1xf32, #tpu.memory_space<vmem>>, %arg5: memref<32x16xbf16, #tpu.memory_space<vmem>>, %arg6: memref<32x1xf32, #tpu.memory_space<vmem>>, %arg7: memref<1x32x512xf32, #tpu.memory_space<vmem>>) attributes {dimension_semantics = [#tpu.dimension_semantics<parallel>, #tpu.dimension_semantics<parallel>], iteration_bounds = array<i64: 2, 1>, scalar_prefetch = 0 : i64, scratch_operands = 0 : i64, tpu.core_type = #tpu.core_type<tc>, window_params = [{transform_indices = @transform_0, window_bounds = array<i64: 1, 1, 8, 4096>}, {pipeline_mode = #tpu.pipeline_mode<synchronous>, transform_indices = @transform_1, window_bounds = array<i64: 16, 8>}, {pipeline_mode = #tpu.pipeline_mode<synchronous>, transform_indices = @transform_2, window_bounds = array<i64: 16, 1>}, {pipeline_mode = #tpu.pipeline_mode<synchronous>, transform_indices = @transform_3, window_bounds = array<i64: 32, 16>}, {pipeline_mode = #tpu.pipeline_mode<synchronous>, transform_indices = @transform_4, window_bounds = array<i64: 32, 1>}, {transform_indices = @transform_5, window_bounds = array<i64: 1, 32, 512>}]} {
    %c0 = arith.constant 0 : index
    %c0_0 = arith.constant 0 : index
    %c0_1 = arith.constant 0 : index
    %c0_2 = arith.constant 0 : index
    %0 = vector.load %arg2[%c0, %c0_0, %c0_1, %c0_2] : memref<1x1x8x4096xbf16, #tpu.memory_space<vmem>>, vector<1x1x8x4096xbf16>
    %1 = vector.shape_cast %0 : vector<1x1x8x4096xbf16> to vector<8x4096xbf16>
    %c0_3 = arith.constant 0 : index
    %c0_4 = arith.constant 0 : index
    %2 = vector.load %arg3[%c0_3, %c0_4] : memref<16x8xbf16, #tpu.memory_space<vmem>>, vector<16x8xbf16>
    %c0_5 = arith.constant 0 : index
    %c0_6 = arith.constant 0 : index
    %3 = vector.load %arg4[%c0_5, %c0_6] : memref<16x1xf32, #tpu.memory_space<vmem>>, vector<16x1xf32>
    %cst = arith.constant dense<0.000000e+00> : vector<16x4096xf32>
    %4 = tpu.matmul %2, %1, %cst {dimension_numbers = #tpu.dot_dimension_numbers<[1], [0], [0], [1], [0, 0, 1, 1], [], []>} : vector<16x8xbf16>, vector<8x4096xbf16>, vector<16x4096xf32> -> vector<16x4096xf32>
    %5 = vector.broadcast %3 : vector<16x1xf32> to vector<16x4096xf32>
    %6 = arith.addf %4, %5 : vector<16x4096xf32>
    %cst_7 = arith.constant 0.000000e+00 : f32
    %7 = vector.broadcast %cst_7 : f32 to vector<16x4096xf32>
    %8 = arith.maximumf %6, %7 : vector<16x4096xf32>
    %9 = arith.truncf %8 : vector<16x4096xf32> to vector<16x4096xbf16>
    %c0_8 = arith.constant 0 : index
    %c0_9 = arith.constant 0 : index
    %10 = vector.load %arg5[%c0_8, %c0_9] : memref<32x16xbf16, #tpu.memory_space<vmem>>, vector<32x16xbf16>
    %c0_10 = arith.constant 0 : index
    %c0_11 = arith.constant 0 : index
    %11 = vector.load %arg6[%c0_10, %c0_11] : memref<32x1xf32, #tpu.memory_space<vmem>>, vector<32x1xf32>
    %cst_12 = arith.constant dense<0.000000e+00> : vector<32x4096xf32>
    %12 = tpu.matmul %10, %9, %cst_12 {dimension_numbers = #tpu.dot_dimension_numbers<[1], [0], [0], [1], [0, 0, 1, 1], [], []>} : vector<32x16xbf16>, vector<16x4096xbf16>, vector<32x4096xf32> -> vector<32x4096xf32>
    %13 = vector.broadcast %11 : vector<32x1xf32> to vector<32x4096xf32>
    %14 = arith.addf %12, %13 : vector<32x4096xf32>
    %cst_13 = arith.constant 0.000000e+00 : f32
    %15 = vector.broadcast %cst_13 : f32 to vector<32x4096xf32>
    %16 = arith.maximumf %14, %15 : vector<32x4096xf32>
    %17 = vector.extract_strided_slice %16 {offsets = [0, 0], sizes = [32, 512], strides = [1, 1]} : vector<32x4096xf32> to vector<32x512xf32>
    %18 = vector.extract_strided_slice %16 {offsets = [0, 512], sizes = [32, 512], strides = [1, 1]} : vector<32x4096xf32> to vector<32x512xf32>
    %19 = arith.maximumf %17, %18 : vector<32x512xf32>
    %20 = vector.extract_strided_slice %16 {offsets = [0, 1024], sizes = [32, 512], strides = [1, 1]} : vector<32x4096xf32> to vector<32x512xf32>
    %21 = arith.maximumf %19, %20 : vector<32x512xf32>
    %22 = vector.extract_strided_slice %16 {offsets = [0, 1536], sizes = [32, 512], strides = [1, 1]} : vector<32x4096xf32> to vector<32x512xf32>
    %23 = arith.maximumf %21, %22 : vector<32x512xf32>
    %24 = vector.extract_strided_slice %16 {offsets = [0, 2048], sizes = [32, 512], strides = [1, 1]} : vector<32x4096xf32> to vector<32x512xf32>
    %25 = arith.maximumf %23, %24 : vector<32x512xf32>
    %26 = vector.extract_strided_slice %16 {offsets = [0, 2560], sizes = [32, 512], strides = [1, 1]} : vector<32x4096xf32> to vector<32x512xf32>
    %27 = arith.maximumf %25, %26 : vector<32x512xf32>
    %28 = vector.extract_strided_slice %16 {offsets = [0, 3072], sizes = [32, 512], strides = [1, 1]} : vector<32x4096xf32> to vector<32x512xf32>
    %29 = arith.maximumf %27, %28 : vector<32x512xf32>
    %30 = vector.extract_strided_slice %16 {offsets = [0, 3584], sizes = [32, 512], strides = [1, 1]} : vector<32x4096xf32> to vector<32x512xf32>
    %31 = arith.maximumf %29, %30 : vector<32x512xf32>
    %c0_14 = arith.constant 0 : index
    %c0_15 = arith.constant 0 : index
    %c0_16 = arith.constant 0 : index
    %32 = vector.load %arg7[%c0_14, %c0_15, %c0_16] : memref<1x32x512xf32, #tpu.memory_space<vmem>>, vector<1x32x512xf32>
    %33 = vector.shape_cast %32 : vector<1x32x512xf32> to vector<32x512xf32>
    %34 = vector.shape_cast %31 : vector<32x512xf32> to vector<1x32x512xf32>
    tpu.vector_store %arg7[%c0_14, %c0_15, %c0_16], %34 {strides = array<i32>} : memref<1x32x512xf32, #tpu.memory_space<vmem>>, vector<1x32x512xf32>,
    return
  }
  func.func @transform_0(%arg0: i32, %arg1: i32) -> (i32, i32, i32, i32) {
    %c0_i32 = arith.constant 0 : i32
    %c0_i32_0 = arith.constant 0 : i32
    %c0_i32_1 = arith.constant 0 : i32
    return %arg0, %arg1, %c0_i32, %c0_i32_0 : i32, i32, i32, i32
  }
  func.func @transform_1(%arg0: i32, %arg1: i32) -> (i32, i32) {
    %c0_i32 = arith.constant 0 : i32
    %c0_i32_0 = arith.constant 0 : i32
    %c0_i32_1 = arith.constant 0 : i32
    return %c0_i32, %c0_i32_0 : i32, i32
  }
  func.func @transform_2(%arg0: i32, %arg1: i32) -> (i32, i32) {
    %c0_i32 = arith.constant 0 : i32
    %c0_i32_0 = arith.constant 0 : i32
    %c0_i32_1 = arith.constant 0 : i32
    return %c0_i32, %c0_i32_0 : i32, i32
  }
  func.func @transform_3(%arg0: i32, %arg1: i32) -> (i32, i32) {
    %c0_i32 = arith.constant 0 : i32
    %c0_i32_0 = arith.constant 0 : i32
    %c0_i32_1 = arith.constant 0 : i32
    return %c0_i32, %c0_i32_0 : i32, i32
  }
  func.func @transform_4(%arg0: i32, %arg1: i32) -> (i32, i32) {
    %c0_i32 = arith.constant 0 : i32
    %c0_i32_0 = arith.constant 0 : i32
    %c0_i32_1 = arith.constant 0 : i32
    return %c0_i32, %c0_i32_0 : i32, i32
  }
  func.func @transform_5(%arg0: i32, %arg1: i32) -> (i32, i32, i32) {
    %c0_i32 = arith.constant 0 : i32
    %c0_i32_0 = arith.constant 0 : i32
    return %arg0, %c0_i32, %arg1 : i32, i32, i32
  }
}

</mosaic_0001>

<llo_original>
// kernel: tpu_custom_call.1
$region0: #{tpu_custom_call.1}
  #allocation0 [shape = 'u32[]', space=smem, size = 0x4, offset = 0x4, fixed_abs, tag = 'smem constant byte address 0x4 - core index']
  #allocation1 [shape = 'u32[144,128]{1,0:T(1,128)}', space=vmem, size = 0x12000, scoped, tag = 'internal scratch']
  %s0 = inlined_call_operand.hbm [shape: bf16[2,1,8,4096], index: 0, kind: input, shape index: {}]
  %s1 = inlined_call_operand.vmem [shape: bf16[16,8], index: 1, kind: input, shape index: {}]
  %s2 = inlined_call_operand.vmem [shape: f32[16,1], index: 2, kind: input, shape index: {}]
  %s3 = inlined_call_operand.vmem [shape: bf16[32,16], index: 3, kind: input, shape index: {}]
  %s4 = inlined_call_operand.vmem [shape: f32[32,1], index: 4, kind: input, shape index: {}]
  %s5 = inlined_call_operand.hbm [shape: f32[2,32,512], index: 5, kind: output, shape index: {}]
  %s6 = sld [smem:[#allocation0]]
  $region57: #{tpu_custom_call.1} parent=0
    _
  %s8 = ssub.s32 1, %s6
  %s9 = scalar_select 0, %s8, %s6
  $region1: #{tpu_custom_call.1} parent=0
    #allocation2 [shape = 'u8[131072]{0}', space=vmem, size = 0x20000, scoped, tag = 'input window, operand 0']
    #allocation3 [shape = 's32[2]{0}', space=sflag, size = 0x8, scoped, tag = 'scoped memory for tpu_custom_call.1']
    #allocation4 [shape = 's32[2]{0}', space=sflag, size = 0x8, scoped, tag = 'scoped memory for tpu_custom_call.1']
    #allocation5 [shape = 'u8[131072]{0}', space=vmem, size = 0x20000, scoped, tag = 'output window, operand 0']
    %10 = vsyncpa [#allocation3], 0
    %s11 = scalar_lea.sflag [#allocation3], 1
    %12 = vsyncpa %s11, 0
    %13 = vsyncpa [#allocation4], 0
    %s14 = scalar_lea.sflag [#allocation4], 1
    %15 = vsyncpa %s14, 0
    loop: start=0, step=1, limit=4
    $region2: #{tpu_custom_call.1} parent=1 // loop_pre_header
      _
    $region3: #{tpu_custom_call.1} parent=1 // loop_header
      %s17 = sphi 0, %s21
      %p18 = scmp.ge.s32.totalorder %s17, 4
      %s24 = sphi 0, %s36
      %s25 = sphi 0, %s32
      %s26 = sphi 0, %s24
      %s27 = sphi 0, %s25
      %s28 = sphi 0, %s26
      %s29 = sphi 0, %s27
      %s41 = sphi 0, %s43
      %s44 = sphi 0, %s41
      %s45 = sphi 0, %s44
      %s61 = sphi 0, %s45
      %s65 = sphi 0, %s65
      %s67 = sphi 0, %s65
      %s68 = sphi 0, %s67
      %s82 = sphi 0, %s68
      %s86 = sphi 0, %s86
      %s88 = sphi 0, %s86
      %s89 = sphi 0, %s88
      %s103 = sphi 0, %s89
      %s107 = sphi 0, %s107
      %s109 = sphi 0, %s107
      %s110 = sphi 0, %s109
      %s124 = sphi 0, %s110
      %s128 = sphi 0, %s128
      %s130 = sphi 0, %s128
      %s131 = sphi 0, %s130
      %s145 = sphi 0, %s131
      %s153 = sphi 0, %s155
      %s156 = sphi 0, %s153
      %s157 = sphi 0, %s156
      %s173 = sphi 0, %s157
    $region4: #{tpu_custom_call.1} parent=1 // loop_header_branch
      %20 = sbr.rel (%p18) target = $region8
    $region5: #{tpu_custom_call.1} parent=1 // loop_body
      %s22 = ssub.s32 %s17, 1
      %s23 = ssub.s32 %s17, 2
      %s30 = sadd.s32 1, %s25
      %p31 = scmp.ge.s32.totalorder %s30, 1
      %s32 = scalar_select %p31, 0, %s30
      %s33 = sadd.s32 1, %s24
      %s34 = scalar_select %p31, %s33, %s24
      %p35 = scmp.ge.s32.totalorder %s34, 2
      %s36 = scalar_select %p35, 0, %s34
      %s37 = ssub.s32 %s24, %s36
      %s38 = ssub.s32 %s25, %s32
      %s39 = sor.u32 %s37, %s38
      %p40 = scmp.eq.s32.totalorder %s39, 0
      %s42 = sadd.s32 %s41, 1
      %s43 = scalar_select %p40, %s41, %s42
      %p46 = pneg %p40
      %p47 = scmp.eq.s32.totalorder %s17, 1
      %p48 = por %p46, %p47
      %p49 = scmp.ne.s32.totalorder %s41, %s44
      %p50 = scmp.eq.s32.totalorder %s17, 0
      %p51 = por %p49, %p50
      %p52 = scmp.ne.s32.totalorder %s41, %s44
      %p53 = scmp.eq.s32.totalorder %s22, 1
      %p54 = por %p52, %p53
      %p55 = scmp.ne.s32.totalorder %s44, %s45
      %p56 = scmp.eq.s32.totalorder %s22, 0
      %p57 = por %p55, %p56
      %p58 = scmp.ne.s32.totalorder %s44, %s45
      %p59 = scmp.eq.s32.totalorder %s23, 1
      %p60 = por %p58, %p59
      %p62 = scmp.ne.s32.totalorder %s45, %s61
      %p63 = scmp.eq.s32.totalorder %s23, 0
      %p64 = por %p62, %p63
      %s66 = sadd.s32 %s65, 1
      %p69 = scmp.eq.s32.totalorder %s17, 1
      %p70 = scmp.ne.s32.totalorder %s65, %s67
      %p71 = scmp.eq.s32.totalorder %s17, 0
      %p72 = por %p70, %p71
      %p73 = scmp.ne.s32.totalorder %s65, %s67
      %p74 = scmp.eq.s32.totalorder %s22, 1
      %p75 = por %p73, %p74
      %p76 = scmp.ne.s32.totalorder %s67, %s68
      %p77 = scmp.eq.s32.totalorder %s22, 0
      %p78 = por %p76, %p77
      %p79 = scmp.ne.s32.totalorder %s67, %s68
      %p80 = scmp.eq.s32.totalorder %s23, 1
      %p81 = por %p79, %p80
      %p83 = scmp.ne.s32.totalorder %s68, %s82
      %p84 = scmp.eq.s32.totalorder %s23, 0
      %p85 = por %p83, %p84
      %s87 = sadd.s32 %s86, 1
      %p90 = scmp.eq.s32.totalorder %s17, 1
      %p91 = scmp.ne.s32.totalorder %s86, %s88
      %p92 = scmp.eq.s32.totalorder %s17, 0
      %p93 = por %p91, %p92
      %p94 = scmp.ne.s32.totalorder %s86, %s88
      %p95 = scmp.eq.s32.totalorder %s22, 1
      %p96 = por %p94, %p95
      %p97 = scmp.ne.s32.totalorder %s88, %s89
      %p98 = scmp.eq.s32.totalorder %s22, 0
      %p99 = por %p97, %p98
      %p100 = scmp.ne.s32.totalorder %s88, %s89
      %p101 = scmp.eq.s32.totalorder %s23, 1
      %p102 = por %p100, %p101
      %p104 = scmp.ne.s32.totalorder %s89, %s103
      %p105 = scmp.eq.s32.totalorder %s23, 0
      %p106 = por %p104, %p105
      %s108 = sadd.s32 %s107, 1
      %p111 = scmp.eq.s32.totalorder %s17, 1
      %p112 = scmp.ne.s32.totalorder %s107, %s109
      %p113 = scmp.eq.s32.totalorder %s17, 0
      %p114 = por %p112, %p113
      %p115 = scmp.ne.s32.totalorder %s107, %s109
      %p116 = scmp.eq.s32.totalorder %s22, 1
      %p117 = por %p115, %p116
      %p118 = scmp.ne.s32.totalorder %s109, %s110
      %p119 = scmp.eq.s32.totalorder %s22, 0
      %p120 = por %p118, %p119
      %p121 = scmp.ne.s32.totalorder %s109, %s110
      %p122 = scmp.eq.s32.totalorder %s23, 1
      %p123 = por %p121, %p122
      %p125 = scmp.ne.s32.totalorder %s110, %s124
      %p126 = scmp.eq.s32.totalorder %s23, 0
      %p127 = por %p125, %p126
      %s129 = sadd.s32 %s128, 1
      %p132 = scmp.eq.s32.totalorder %s17, 1
      %p133 = scmp.ne.s32.totalorder %s128, %s130
      %p134 = scmp.eq.s32.totalorder %s17, 0
      %p135 = por %p133, %p134
      %p136 = scmp.ne.s32.totalorder %s128, %s130
      %p137 = scmp.eq.s32.totalorder %s22, 1
      %p138 = por %p136, %p137
      %p139 = scmp.ne.s32.totalorder %s130, %s131
      %p140 = scmp.eq.s32.totalorder %s22, 0
      %p141 = por %p139, %p140
      %p142 = scmp.ne.s32.totalorder %s130, %s131
      %p143 = scmp.eq.s32.totalorder %s23, 1
      %p144 = por %p142, %p143
      %p146 = scmp.ne.s32.totalorder %s131, %s145
      %p147 = scmp.eq.s32.totalorder %s23, 0
      %p148 = por %p146, %p147
      %s149 = ssub.s32 %s24, %s36
      %s150 = ssub.s32 %s25, %s32
      %s151 = sor.u32 %s149, %s150
      %p152 = scmp.eq.s32.totalorder %s151, 0
      %s154 = sadd.s32 %s153, 1
      %s155 = scalar_select %p152, %s153, %s154
      %p158 = pneg %p152
      %p159 = scmp.eq.s32.totalorder %s17, 1
      %p160 = por %p158, %p159
      %p161 = scmp.ne.s32.totalorder %s153, %s156
      %p162 = scmp.eq.s32.totalorder %s17, 0
      %p163 = por %p161, %p162
      %p164 = scmp.ne.s32.totalorder %s153, %s156
      %p165 = scmp.eq.s32.totalorder %s22, 1
      %p166 = por %p164, %p165
      %p167 = scmp.ne.s32.totalorder %s156, %s157
      %p168 = scmp.eq.s32.totalorder %s22, 0
      %p169 = por %p167, %p168
      %p170 = scmp.ne.s32.totalorder %s156, %s157
      %p171 = scmp.eq.s32.totalorder %s23, 1
      %p172 = por %p170, %p171
      %p174 = scmp.ne.s32.totalorder %s157, %s173
      %p175 = scmp.eq.s32.totalorder %s23, 0
      %p176 = por %p174, %p175
      %p177 = scmp.le.s32.totalorder 1, %s17
      %p178 = scmp.lt.s32.totalorder %s17, 3
      %p179 = pnand %p177, %p178
      %p180 = pneg %p179
      // Predicated region
      $region9: #{tpu_custom_call.1} parent=5 // pred_check
        _
      $region10: #{tpu_custom_call.1} parent=5 // pred_check_branch
        %182 = sbr.rel (%p179) target = $region12
      $region11: #{tpu_custom_call.1} parent=5 // pred_region
        %s183 = ssub.s32 %s17, 1
        // Predicated region
        $region13: #{tpu_custom_call.1} parent=11 // pred_check
          %p184 = pneg %p78
        $region14: #{tpu_custom_call.1} parent=11 // pred_check_branch
          %186 = sbr.rel (%p184) target = $region16
        $region15: #{tpu_custom_call.1} parent=11 // pred_region
          _
        $region16: #{tpu_custom_call.1} parent=11 // pred_fallthru
          _
        // Predicated region
        $region17: #{tpu_custom_call.1} parent=11 // pred_check
          %p187 = pneg %p99
        $region18: #{tpu_custom_call.1} parent=11 // pred_check_branch
          %189 = sbr.rel (%p187) target = $region20
        $region19: #{tpu_custom_call.1} parent=11 // pred_region
          _
        $region20: #{tpu_custom_call.1} parent=11 // pred_fallthru
          _
        // Predicated region
        $region21: #{tpu_custom_call.1} parent=11 // pred_check
          %p190 = pneg %p120
        $region22: #{tpu_custom_call.1} parent=11 // pred_check_branch
          %192 = sbr.rel (%p190) target = $region24
        $region23: #{tpu_custom_call.1} parent=11 // pred_region
          _
        $region24: #{tpu_custom_call.1} parent=11 // pred_fallthru
          _
        // Predicated region
        $region25: #{tpu_custom_call.1} parent=11 // pred_check
          %p193 = pneg %p141
        $region26: #{tpu_custom_call.1} parent=11 // pred_check_branch
          %195 = sbr.rel (%p193) target = $region28
        $region27: #{tpu_custom_call.1} parent=11 // pred_region
          _
        $region28: #{tpu_custom_call.1} parent=11 // pred_fallthru
          _
      $region12: #{tpu_custom_call.1} parent=5 // pred_fallthru
        _
      %p196 = scmp.lt.s32.totalorder %s17, 2
      // Predicated region
      $region29: #{tpu_custom_call.1} parent=5 // pred_check
        %p197 = pneg %p196
      $region30: #{tpu_custom_call.1} parent=5 // pred_check_branch
        %199 = sbr.rel (%p197) target = $region32
      $region31: #{tpu_custom_call.1} parent=5 // pred_region
        // Predicated region
        $region33: #{tpu_custom_call.1} parent=31 // pred_check
          %p200 = pneg %p51
        $region34: #{tpu_custom_call.1} parent=31 // pred_check_branch
          %202 = sbr.rel (%p200) target = $region36
        $region35: #{tpu_custom_call.1} parent=31 // pred_region
          %s203 = sand.u32 %s41, 1
          %s204 = scalar_lea.sflag [#allocation3], %s203
          %s205 = sand.u32 %s41, 1
          %s206 = smul.addr %s205, 128
          %s207 = scalar_lea.vmem [#allocation2], %s206
          %s209 = ssub.s32 2048, 2048
          %210 = vsyncadd %s204, %s209
          %s211 = smul.addr %s25, 32
          %s212 = smul.addr %s24, 32
          %s213 = sadd.s32 %s211, %s212
          %s214 = smul.addr %s213, 64
          %s215 = scalar_lea.hbm %s0, %s214
          %s217 = sshll.u32 %s207, 4
          %s218 = int_to_ptr.vmem [resolvable:$true] %s217
          %220 = dma.hbm_to_vmem [thread:$0]  %s215, 2048, %s218, %s204
        $region36: #{tpu_custom_call.1} parent=31 // pred_fallthru
          _
      $region32: #{tpu_custom_call.1} parent=5 // pred_fallthru
        _
      %p221 = scmp.le.s32.totalorder 1, %s17
      %p222 = scmp.lt.s32.totalorder %s17, 3
      %p223 = pnand %p221, %p222
      %p224 = pneg %p223
      // Predicated region
      $region37: #{tpu_custom_call.1} parent=5 // pred_check
        _
      $region38: #{tpu_custom_call.1} parent=5 // pred_check_branch
        %226 = sbr.rel (%p223) target = $region40
      $region39: #{tpu_custom_call.1} parent=5 // pred_region
        %s227 = ssub.s32 %s17, 1
        %s228 = sand.u32 %s44, 1
        %s229 = scalar_lea.sflag [#allocation3], %s228
        %s230 = sand.u32 %s44, 1
        %s231 = smul.addr %s230, 128
        %s232 = scalar_lea.vmem [#allocation2], %s231
        // Predicated region
        $region41: #{tpu_custom_call.1} parent=39 // pred_check
          %p233 = pneg %p57
        $region42: #{tpu_custom_call.1} parent=39 // pred_check_branch
          %235 = sbr.rel (%p233) target = $region44
        $region43: #{tpu_custom_call.1} parent=39 // pred_region
          %236 = dma.done %s229, 2048
        $region44: #{tpu_custom_call.1} parent=39 // pred_fallthru
          _
        %s237 = sand.u32 %s44, 1
        %s238 = scalar_lea.sflag [#allocation3], %s237
        %s239 = sand.u32 %s44, 1
        %s240 = smul.addr %s239, 128
        %s241 = scalar_lea.vmem [#allocation2], %s240
        %p242 = pneg %p57
        %p243 = pneg %p54
        %p244 = pneg %p78
        %p245 = pneg %p75
        %p246 = pneg %p99
        %p247 = pneg %p96
        %p248 = pneg %p120
        %p249 = pneg %p117
        %p250 = pneg %p141
        %p251 = pneg %p138
        %p252 = pneg %p169
        %p253 = pneg %p166
        %s254 = sand.u32 %s156, 1
        %s255 = scalar_lea.sflag [#allocation4], %s254
        %s256 = sand.u32 %s156, 1
        %s257 = smul.addr %s256, 128
        %s258 = scalar_lea.vmem [#allocation5], %s257
        %s259 = smul.u32 4, %s27
        %v261 = vld [vmem:[%s232] sm:$0xff]
        %v262 = vld [vmem:[%s232 + $0x8] sm:$0xff]
        %v263 = vld [vmem:[%s232 + $0x10] sm:$0xff]
        %v264 = vld [vmem:[%s232 + $0x18] sm:$0xff]
        %v265 = vld [vmem:[%s232 + $0x20] sm:$0xff]
        %v266 = vld [vmem:[%s232 + $0x28] sm:$0xff]
        %v267 = vld [vmem:[%s232 + $0x30] sm:$0xff]
        %v268 = vld [vmem:[%s232 + $0x38] sm:$0xff]
        %v269 = vld [vmem:[%s232 + $0x40] sm:$0xff]
        %v270 = vld [vmem:[%s232 + $0x48] sm:$0xff]
        %v271 = vld [vmem:[%s232 + $0x50] sm:$0xff]
        %v272 = vld [vmem:[%s232 + $0x58] sm:$0xff]
        %v273 = vld [vmem:[%s232 + $0x60] sm:$0xff]
        %v274 = vld [vmem:[%s232 + $0x68] sm:$0xff]
        %v275 = vld [vmem:[%s232 + $0x70] sm:$0xff]
        %v276 = vld [vmem:[%s232 + $0x78] sm:$0xff]
        %v277 = vld [vmem:[%s1] sm:$0xf]
        %v278 = vld [vmem:[%s1 + $0x4] sm:$0xf]
        %v279 = vld [vmem:[%s2] sm:$0xff]
        %v280 = vld [vmem:[%s2 + $0x8] sm:$0xff]
        %282 = vset.pattern.permute.xlu0 0
        %283 = vperm.xlu0 %282, %v279
        %v284 = vpop.permute.xlu0 %283
        %287 = vset.pattern.permute.xlu0 0
        %288 = vperm.xlu0 %287, %v280
        %v289 = vpop.permute.xlu0 %288
        %v293 = vunpack.c.l.b16 %v277
        %v294 = vunpack.c.l.b16 %v278
        %v295 = vpack.c.b16 %v294, %v293
        %v312 = vunpack.c.l.b16 %v261
        %v313 = vunpack.c.h.b16 %v261
        %v314 = vunpack.c.l.b16 %v262
        %v315 = vunpack.c.h.b16 %v262
        %v316 = vunpack.c.l.b16 %v263
        %v317 = vunpack.c.h.b16 %v263
        %v318 = vunpack.c.l.b16 %v264
        %v319 = vunpack.c.h.b16 %v264
        %v320 = vunpack.c.l.b16 %v265
        %v321 = vunpack.c.h.b16 %v265
        %v322 = vunpack.c.l.b16 %v266
        %v323 = vunpack.c.h.b16 %v266
        %v324 = vunpack.c.l.b16 %v267
        %v325 = vunpack.c.h.b16 %v267
        %v326 = vunpack.c.l.b16 %v268
        %v327 = vunpack.c.h.b16 %v268
        %v328 = vunpack.c.l.b16 %v269
        %v329 = vunpack.c.h.b16 %v269
        %v330 = vunpack.c.l.b16 %v270
        %v331 = vunpack.c.h.b16 %v270
        %v332 = vunpack.c.l.b16 %v271
        %v333 = vunpack.c.h.b16 %v271
        %v334 = vunpack.c.l.b16 %v272
        %v335 = vunpack.c.h.b16 %v272
        %v336 = vunpack.c.l.b16 %v273
        %v337 = vunpack.c.h.b16 %v273
        %v338 = vunpack.c.l.b16 %v274
        %v339 = vunpack.c.h.b16 %v274
        %v340 = vunpack.c.l.b16 %v275
        %v341 = vunpack.c.h.b16 %v275
        %v342 = vunpack.c.l.b16 %v276
        %v343 = vunpack.c.h.b16 %v276
        %v344 = vpack.c.b16 %v312, %v312
        %v345 = vpack.c.b16 %v313, %v313
        %v346 = vpack.c.b16 %v314, %v314
        %v347 = vpack.c.b16 %v315, %v315
        %v348 = vpack.c.b16 %v316, %v316
        %v349 = vpack.c.b16 %v317, %v317
        %v350 = vpack.c.b16 %v318, %v318
        %v351 = vpack.c.b16 %v319, %v319
        %v352 = vpack.c.b16 %v320, %v320
        %v353 = vpack.c.b16 %v321, %v321
        %v354 = vpack.c.b16 %v322, %v322
        %v355 = vpack.c.b16 %v323, %v323
        %v356 = vpack.c.b16 %v324, %v324
        %v357 = vpack.c.b16 %v325, %v325
        %v358 = vpack.c.b16 %v326, %v326
        %v359 = vpack.c.b16 %v327, %v327
        %v360 = vpack.c.b16 %v328, %v328
        %v361 = vpack.c.b16 %v329, %v329
        %v362 = vpack.c.b16 %v330, %v330
        %v363 = vpack.c.b16 %v331, %v331
        %v364 = vpack.c.b16 %v332, %v332
        %v365 = vpack.c.b16 %v333, %v333
        %v366 = vpack.c.b16 %v334, %v334
        %v367 = vpack.c.b16 %v335, %v335
        %v368 = vpack.c.b16 %v336, %v336
        %v369 = vpack.c.b16 %v337, %v337
        %v370 = vpack.c.b16 %v338, %v338
        %v371 = vpack.c.b16 %v339, %v339
        %v372 = vpack.c.b16 %v340, %v340
        %v373 = vpack.c.b16 %v341, %v341
        %v374 = vpack.c.b16 %v342, %v342
        %v375 = vpack.c.b16 %v343, %v343
        %vm376 = vcmask 64512
        %v378 = vsel %vm376, %v295, 0
        %vm380 = vcmask 1043456
        %v382 = vsel %vm380, %v344, 0
        %v385 = vsel %vm380, %v345, 0
        %v388 = vsel %vm380, %v346, 0
        %v391 = vsel %vm380, %v347, 0
        %v394 = vsel %vm380, %v348, 0
        %v397 = vsel %vm380, %v349, 0
        %v400 = vsel %vm380, %v350, 0
        %v403 = vsel %vm380, %v351, 0
        %v406 = vsel %vm380, %v352, 0
        %v409 = vsel %vm380, %v353, 0
        %v412 = vsel %vm380, %v354, 0
        %v415 = vsel %vm380, %v355, 0
        %v418 = vsel %vm380, %v356, 0
        %v421 = vsel %vm380, %v357, 0
        %v424 = vsel %vm380, %v358, 0
        %v427 = vsel %vm380, %v359, 0
        %v430 = vsel %vm380, %v360, 0
        %v433 = vsel %vm380, %v361, 0
        %v436 = vsel %vm380, %v362, 0
        %v439 = vsel %vm380, %v363, 0
        %v442 = vsel %vm380, %v364, 0
        %v445 = vsel %vm380, %v365, 0
        %v448 = vsel %vm380, %v366, 0
        %v451 = vsel %vm380, %v367, 0
        %v454 = vsel %vm380, %v368, 0
        %v457 = vsel %vm380, %v369, 0
        %v460 = vsel %vm380, %v370, 0
        %v463 = vsel %vm380, %v371, 0
        %v466 = vsel %vm380, %v372, 0
        %v469 = vsel %vm380, %v373, 0
        %v472 = vsel %vm380, %v374, 0
        %v475 = vsel %vm380, %v375, 0
        %477 = vmatprep.subr.bf16.mxu0 0
        %478 = vmatpush1.bf16.msra.mxu0 0
        %479 = vmatprep.subr.bf16.mxu0 0
        %480 = vmatpush1.bf16.msra.mxu0 0
        %481 = vmatprep.subr.bf16.mxu0 0
        %482 = vmatpush1.bf16.msra.mxu0 0
        %483 = vmatprep.subr.bf16.mxu0 0
        %484 = vmatpush1.bf16.msra.mxu0 0
        %485 = vmatprep.subr.bf16.mxu0 0
        %486 = vmatpush1.bf16.msra.mxu0 0
        %487 = vmatprep.subr.bf16.mxu0 0
        %488 = vmatpush1.bf16.msra.mxu0 0
        %489 = vmatprep.subr.bf16.mxu0 0
        %490 = vmatpush1.bf16.msra.mxu0 0
        %491 = vmatprep.subr.bf16.mxu0 %v385
        %492 = vmatpush1.bf16.msra.mxu0 %v382
        %493 = vmatprep.subr.bf16.mxu0 0
        %494 = vmatpush2.bf16.msra.mxu0 0
        %495 = vmatprep.subr.bf16.mxu0 0
        %496 = vmatpush2.bf16.msra.mxu0 0
        %497 = vmatprep.subr.bf16.mxu0 0
        %498 = vmatpush2.bf16.msra.mxu0 0
        %499 = vmatprep.subr.bf16.mxu0 0
        %500 = vmatpush2.bf16.msra.mxu0 0
        %501 = vmatprep.subr.bf16.mxu0 0
        %502 = vmatpush2.bf16.msra.mxu0 0
        %503 = vmatprep.subr.bf16.mxu0 0
        %504 = vmatpush2.bf16.msra.mxu0 0
        %505 = vmatprep.subr.bf16.mxu0 0
        %506 = vmatpush2.bf16.msra.mxu0 0
        %507 = vmatprep.subr.bf16.mxu0 0
        %508 = vmatpush2.bf16.msra.mxu0 0
        %509 = vmatprep.mubr.bf16.mxu0 0
        %510 = vmatmul.mubr.bf16.gmra.mxu0 %v378
        %v511 = vpop.f32.mrf.mxu0
        %v512 = vadd.f32 %v284, %v511
        %v513 = vpop.f32.mrf.mxu0
        %v514 = vadd.f32 %v284, %v513
        %v515 = vpop.f32.mrf.mxu0
        %v516 = vadd.f32 %v289, %v515
        %v517 = vpop.f32.mrf.mxu0
        %v518 = vadd.f32 %v289, %v517
        %519 = vdwg.mxu0
        %520 = vmatprep.subr.bf16.mxu0 0
        %521 = vmatpush1.bf16.msra.mxu0 0
        %522 = vmatprep.subr.bf16.mxu0 0
        %523 = vmatpush1.bf16.msra.mxu0 0
        %524 = vmatprep.subr.bf16.mxu0 0
        %525 = vmatpush1.bf16.msra.mxu0 0
        %526 = vmatprep.subr.bf16.mxu0 0
        %527 = vmatpush1.bf16.msra.mxu0 0
        %528 = vmatprep.subr.bf16.mxu0 0
        %529 = vmatpush1.bf16.msra.mxu0 0
        %530 = vmatprep.subr.bf16.mxu0 0
        %531 = vmatpush1.bf16.msra.mxu0 0
        %532 = vmatprep.subr.bf16.mxu0 0
        %533 = vmatpush1.bf16.msra.mxu0 0
        %534 = vmatprep.subr.bf16.mxu0 %v391
        %535 = vmatpush1.bf16.msra.mxu0 %v388
        %536 = vmatprep.subr.bf16.mxu0 0
        %537 = vmatpush2.bf16.msra.mxu0 0
        %538 = vmatprep.subr.bf16.mxu0 0
        %539 = vmatpush2.bf16.msra.mxu0 0
        %540 = vmatprep.subr.bf16.mxu0 0
        %541 = vmatpush2.bf16.msra.mxu0 0
        %542 = vmatprep.subr.bf16.mxu0 0
        %543 = vmatpush2.bf16.msra.mxu0 0
        %544 = vmatprep.subr.bf16.mxu0 0
        %545 = vmatpush2.bf16.msra.mxu0 0
        %546 = vmatprep.subr.bf16.mxu0 0
        %547 = vmatpush2.bf16.msra.mxu0 0
        %548 = vmatprep.subr.bf16.mxu0 0
        %549 = vmatpush2.bf16.msra.mxu0 0
        %550 = vmatprep.subr.bf16.mxu0 0
        %551 = vmatpush2.bf16.msra.mxu0 0
        %552 = vmatprep.mubr.bf16.mxu0 0
        %553 = vmatmul.mubr.bf16.gmra.mxu0 %v378
        %v554 = vpop.f32.mrf.mxu0
        %v555 = vadd.f32 %v284, %v554
        %v556 = vpop.f32.mrf.mxu0
        %v557 = vadd.f32 %v284, %v556
        %v558 = vpop.f32.mrf.mxu0
        %v559 = vadd.f32 %v289, %v558
        %v560 = vpop.f32.mrf.mxu0
        %v561 = vadd.f32 %v289, %v560
        %562 = vdwg.mxu0
        %563 = vmatprep.subr.bf16.mxu0 0
        %564 = vmatpush1.bf16.msra.mxu0 0
        %565 = vmatprep.subr.bf16.mxu0 0
        %566 = vmatpush1.bf16.msra.mxu0 0
        %567 = vmatprep.subr.bf16.mxu0 0
        %568 = vmatpush1.bf16.msra.mxu0 0
        %569 = vmatprep.subr.bf16.mxu0 0
        %570 = vmatpush1.bf16.msra.mxu0 0
        %571 = vmatprep.subr.bf16.mxu0 0
        %572 = vmatpush1.bf16.msra.mxu0 0
        %573 = vmatprep.subr.bf16.mxu0 0
        %574 = vmatpush1.bf16.msra.mxu0 0
        %575 = vmatprep.subr.bf16.mxu0 0
        %576 = vmatpush1.bf16.msra.mxu0 0
        %577 = vmatprep.subr.bf16.mxu0 %v397
        %578 = vmatpush1.bf16.msra.mxu0 %v394
        %579 = vmatprep.subr.bf16.mxu0 0
        %580 = vmatpush2.bf16.msra.mxu0 0
        %581 = vmatprep.subr.bf16.mxu0 0
        %582 = vmatpush2.bf16.msra.mxu0 0
        %583 = vmatprep.subr.bf16.mxu0 0
        %584 = vmatpush2.bf16.msra.mxu0 0
        %585 = vmatprep.subr.bf16.mxu0 0
        %586 = vmatpush2.bf16.msra.mxu0 0
        %587 = vmatprep.subr.bf16.mxu0 0
        %588 = vmatpush2.bf16.msra.mxu0 0
        %589 = vmatprep.subr.bf16.mxu0 0
        %590 = vmatpush2.bf16.msra.mxu0 0
        %591 = vmatprep.subr.bf16.mxu0 0
        %592 = vmatpush2.bf16.msra.mxu0 0
        %593 = vmatprep.subr.bf16.mxu0 0
        %594 = vmatpush2.bf16.msra.mxu0 0
        %595 = vmatprep.mubr.bf16.mxu0 0
        %596 = vmatmul.mubr.bf16.gmra.mxu0 %v378
        %v597 = vpop.f32.mrf.mxu0
        %v598 = vadd.f32 %v284, %v597
        %v599 = vpop.f32.mrf.mxu0
        %v600 = vadd.f32 %v284, %v599
        %v601 = vpop.f32.mrf.mxu0
        %v602 = vadd.f32 %v289, %v601
        %v603 = vpop.f32.mrf.mxu0
        %v604 = vadd.f32 %v289, %v603
        %605 = vdwg.mxu0
        %606 = vmatprep.subr.bf16.mxu0 0
        %607 = vmatpush1.bf16.msra.mxu0 0
        %608 = vmatprep.subr.bf16.mxu0 0
        %609 = vmatpush1.bf16.msra.mxu0 0
        %610 = vmatprep.subr.bf16.mxu0 0
        %611 = vmatpush1.bf16.msra.mxu0 0
        %612 = vmatprep.subr.bf16.mxu0 0
        %613 = vmatpush1.bf16.msra.mxu0 0
        %614 = vmatprep.subr.bf16.mxu0 0
        %615 = vmatpush1.bf16.msra.mxu0 0
        %616 = vmatprep.subr.bf16.mxu0 0
        %617 = vmatpush1.bf16.msra.mxu0 0
        %618 = vmatprep.subr.bf16.mxu0 0
        %619 = vmatpush1.bf16.msra.mxu0 0
        %620 = vmatprep.subr.bf16.mxu0 %v403
        %621 = vmatpush1.bf16.msra.mxu0 %v400
        %622 = vmatprep.subr.bf16.mxu0 0
        %623 = vmatpush2.bf16.msra.mxu0 0
        %624 = vmatprep.subr.bf16.mxu0 0
        %625 = vmatpush2.bf16.msra.mxu0 0
        %626 = vmatprep.subr.bf16.mxu0 0
        %627 = vmatpush2.bf16.msra.mxu0 0
        %628 = vmatprep.subr.bf16.mxu0 0
        %629 = vmatpush2.bf16.msra.mxu0 0
        %630 = vmatprep.subr.bf16.mxu0 0
        %631 = vmatpush2.bf16.msra.mxu0 0
        %632 = vmatprep.subr.bf16.mxu0 0
        %633 = vmatpush2.bf16.msra.mxu0 0
        %634 = vmatprep.subr.bf16.mxu0 0
        %635 = vmatpush2.bf16.msra.mxu0 0
        %636 = vmatprep.subr.bf16.mxu0 0
        %637 = vmatpush2.bf16.msra.mxu0 0
        %638 = vmatprep.mubr.bf16.mxu0 0
        %639 = vmatmul.mubr.bf16.gmra.mxu0 %v378
        %v640 = vpop.f32.mrf.mxu0
        %v641 = vadd.f32 %v284, %v640
        %v642 = vpop.f32.mrf.mxu0
        %v643 = vadd.f32 %v284, %v642
        %v644 = vpop.f32.mrf.mxu0
        %v645 = vadd.f32 %v289, %v644
        %v646 = vpop.f32.mrf.mxu0
        %v647 = vadd.f32 %v289, %v646
        %648 = vdwg.mxu0
        %649 = vmatprep.subr.bf16.mxu0 0
        %650 = vmatpush1.bf16.msra.mxu0 0
        %651 = vmatprep.subr.bf16.mxu0 0
        %652 = vmatpush1.bf16.msra.mxu0 0
        %653 = vmatprep.subr.bf16.mxu0 0
        %654 = vmatpush1.bf16.msra.mxu0 0
        %655 = vmatprep.subr.bf16.mxu0 0
        %656 = vmatpush1.bf16.msra.mxu0 0
        %657 = vmatprep.subr.bf16.mxu0 0
        %658 = vmatpush1.bf16.msra.mxu0 0
        %659 = vmatprep.subr.bf16.mxu0 0
        %660 = vmatpush1.bf16.msra.mxu0 0
        %661 = vmatprep.subr.bf16.mxu0 0
        %662 = vmatpush1.bf16.msra.mxu0 0
        %663 = vmatprep.subr.bf16.mxu0 %v409
        %664 = vmatpush1.bf16.msra.mxu0 %v406
        %665 = vmatprep.subr.bf16.mxu0 0
        %666 = vmatpush2.bf16.msra.mxu0 0
        %667 = vmatprep.subr.bf16.mxu0 0
        %668 = vmatpush2.bf16.msra.mxu0 0
        %669 = vmatprep.subr.bf16.mxu0 0
        %670 = vmatpush2.bf16.msra.mxu0 0
        %671 = vmatprep.subr.bf16.mxu0 0
        %672 = vmatpush2.bf16.msra.mxu0 0
        %673 = vmatprep.subr.bf16.mxu0 0
        %674 = vmatpush2.bf16.msra.mxu0 0
        %675 = vmatprep.subr.bf16.mxu0 0
        %676 = vmatpush2.bf16.msra.mxu0 0
        %677 = vmatprep.subr.bf16.mxu0 0
        %678 = vmatpush2.bf16.msra.mxu0 0
        %679 = vmatprep.subr.bf16.mxu0 0
        %680 = vmatpush2.bf16.msra.mxu0 0
        %681 = vmatprep.mubr.bf16.mxu0 0
        %682 = vmatmul.mubr.bf16.gmra.mxu0 %v378
        %v683 = vpop.f32.mrf.mxu0
        %v684 = vadd.f32 %v284, %v683
        %v685 = vpop.f32.mrf.mxu0
        %v686 = vadd.f32 %v284, %v685
        %v687 = vpop.f32.mrf.mxu0
        %v688 = vadd.f32 %v289, %v687
        %v689 = vpop.f32.mrf.mxu0
        %v690 = vadd.f32 %v289, %v689
        %691 = vdwg.mxu0
        %692 = vmatprep.subr.bf16.mxu0 0
        %693 = vmatpush1.bf16.msra.mxu0 0
        %694 = vmatprep.subr.bf16.mxu0 0
        %695 = vmatpush1.bf16.msra.mxu0 0
        %696 = vmatprep.subr.bf16.mxu0 0
        %697 = vmatpush1.bf16.msra.mxu0 0
        %698 = vmatprep.subr.bf16.mxu0 0
        %699 = vmatpush1.bf16.msra.mxu0 0
        %700 = vmatprep.subr.bf16.mxu0 0
        %701 = vmatpush1.bf16.msra.mxu0 0
        %702 = vmatprep.subr.bf16.mxu0 0
        %703 = vmatpush1.bf16.msra.mxu0 0
        %704 = vmatprep.subr.bf16.mxu0 0
        %705 = vmatpush1.bf16.msra.mxu0 0
        %706 = vmatprep.subr.bf16.mxu0 %v415
        %707 = vmatpush1.bf16.msra.mxu0 %v412
        %708 = vmatprep.subr.bf16.mxu0 0
        %709 = vmatpush2.bf16.msra.mxu0 0
        %710 = vmatprep.subr.bf16.mxu0 0
        %711 = vmatpush2.bf16.msra.mxu0 0
        %712 = vmatprep.subr.bf16.mxu0 0
        %713 = vmatpush2.bf16.msra.mxu0 0
        %714 = vmatprep.subr.bf16.mxu0 0
        %715 = vmatpush2.bf16.msra.mxu0 0
        %716 = vmatprep.subr.bf16.mxu0 0
        %717 = vmatpush2.bf16.msra.mxu0 0
        %718 = vmatprep.subr.bf16.mxu0 0
        %719 = vmatpush2.bf16.msra.mxu0 0
        %720 = vmatprep.subr.bf16.mxu0 0
        %721 = vmatpush2.bf16.msra.mxu0 0
        %722 = vmatprep.subr.bf16.mxu0 0
        %723 = vmatpush2.bf16.msra.mxu0 0
        %724 = vmatprep.mubr.bf16.mxu0 0
        %725 = vmatmul.mubr.bf16.gmra.mxu0 %v378
        %v726 = vpop.f32.mrf.mxu0
        %v727 = vadd.f32 %v284, %v726
        %v728 = vpop.f32.mrf.mxu0
        %v729 = vadd.f32 %v284, %v728
        %v730 = vpop.f32.mrf.mxu0
        %v731 = vadd.f32 %v289, %v730
        %v732 = vpop.f32.mrf.mxu0
        %v733 = vadd.f32 %v289, %v732
        %734 = vdwg.mxu0
        %735 = vmatprep.subr.bf16.mxu0 0
        %736 = vmatpush1.bf16.msra.mxu0 0
        %737 = vmatprep.subr.bf16.mxu0 0
        %738 = vmatpush1.bf16.msra.mxu0 0
        %739 = vmatprep.subr.bf16.mxu0 0
        %740 = vmatpush1.bf16.msra.mxu0 0
        %741 = vmatprep.subr.bf16.mxu0 0
        %742 = vmatpush1.bf16.msra.mxu0 0
        %743 = vmatprep.subr.bf16.mxu0 0
        %744 = vmatpush1.bf16.msra.mxu0 0
        %745 = vmatprep.subr.bf16.mxu0 0
        %746 = vmatpush1.bf16.msra.mxu0 0
        %747 = vmatprep.subr.bf16.mxu0 0
        %748 = vmatpush1.bf16.msra.mxu0 0
        %749 = vmatprep.subr.bf16.mxu0 %v421
        %750 = vmatpush1.bf16.msra.mxu0 %v418
        %751 = vmatprep.subr.bf16.mxu0 0
        %752 = vmatpush2.bf16.msra.mxu0 0
        %753 = vmatprep.subr.bf16.mxu0 0
        %754 = vmatpush2.bf16.msra.mxu0 0
        %755 = vmatprep.subr.bf16.mxu0 0
        %756 = vmatpush2.bf16.msra.mxu0 0
        %757 = vmatprep.subr.bf16.mxu0 0
        %758 = vmatpush2.bf16.msra.mxu0 0
        %759 = vmatprep.subr.bf16.mxu0 0
        %760 = vmatpush2.bf16.msra.mxu0 0
        %761 = vmatprep.subr.bf16.mxu0 0
        %762 = vmatpush2.bf16.msra.mxu0 0
        %763 = vmatprep.subr.bf16.mxu0 0
        %764 = vmatpush2.bf16.msra.mxu0 0
        %765 = vmatprep.subr.bf16.mxu0 0
        %766 = vmatpush2.bf16.msra.mxu0 0
        %767 = vmatprep.mubr.bf16.mxu0 0
        %768 = vmatmul.mubr.bf16.gmra.mxu0 %v378
        %v769 = vpop.f32.mrf.mxu0
        %v770 = vadd.f32 %v284, %v769
        %v771 = vpop.f32.mrf.mxu0
        %v772 = vadd.f32 %v284, %v771
        %v773 = vpop.f32.mrf.mxu0
        %v774 = vadd.f32 %v289, %v773
        %v775 = vpop.f32.mrf.mxu0
        %v776 = vadd.f32 %v289, %v775
        %777 = vdwg.mxu0
        %778 = vmatprep.subr.bf16.mxu0 0
        %779 = vmatpush1.bf16.msra.mxu0 0
        %780 = vmatprep.subr.bf16.mxu0 0
        %781 = vmatpush1.bf16.msra.mxu0 0
        %782 = vmatprep.subr.bf16.mxu0 0
        %783 = vmatpush1.bf16.msra.mxu0 0
        %784 = vmatprep.subr.bf16.mxu0 0
        %785 = vmatpush1.bf16.msra.mxu0 0
        %786 = vmatprep.subr.bf16.mxu0 0
        %787 = vmatpush1.bf16.msra.mxu0 0
        %788 = vmatprep.subr.bf16.mxu0 0
        %789 = vmatpush1.bf16.msra.mxu0 0
        %790 = vmatprep.subr.bf16.mxu0 0
        %791 = vmatpush1.bf16.msra.mxu0 0
        %792 = vmatprep.subr.bf16.mxu0 %v427
        %793 = vmatpush1.bf16.msra.mxu0 %v424
        %794 = vmatprep.subr.bf16.mxu0 0
        %795 = vmatpush2.bf16.msra.mxu0 0
        %796 = vmatprep.subr.bf16.mxu0 0
        %797 = vmatpush2.bf16.msra.mxu0 0
        %798 = vmatprep.subr.bf16.mxu0 0
        %799 = vmatpush2.bf16.msra.mxu0 0
        %800 = vmatprep.subr.bf16.mxu0 0
        %801 = vmatpush2.bf16.msra.mxu0 0
        %802 = vmatprep.subr.bf16.mxu0 0
        %803 = vmatpush2.bf16.msra.mxu0 0
        %804 = vmatprep.subr.bf16.mxu0 0
        %805 = vmatpush2.bf16.msra.mxu0 0
        %806 = vmatprep.subr.bf16.mxu0 0
        %807 = vmatpush2.bf16.msra.mxu0 0
        %808 = vmatprep.subr.bf16.mxu0 0
        %809 = vmatpush2.bf16.msra.mxu0 0
        %810 = vmatprep.mubr.bf16.mxu0 0
        %811 = vmatmul.mubr.bf16.gmra.mxu0 %v378
        %v812 = vpop.f32.mrf.mxu0
        %v813 = vadd.f32 %v284, %v812
        %v814 = vpop.f32.mrf.mxu0
        %v815 = vadd.f32 %v284, %v814
        %v816 = vpop.f32.mrf.mxu0
        %v817 = vadd.f32 %v289, %v816
        %v818 = vpop.f32.mrf.mxu0
        %v819 = vadd.f32 %v289, %v818
        %820 = vdwg.mxu0
        %821 = vmatprep.subr.bf16.mxu0 0
        %822 = vmatpush1.bf16.msra.mxu0 0
        %823 = vmatprep.subr.bf16.mxu0 0
        %824 = vmatpush1.bf16.msra.mxu0 0
        %825 = vmatprep.subr.bf16.mxu0 0
        %826 = vmatpush1.bf16.msra.mxu0 0
        %827 = vmatprep.subr.bf16.mxu0 0
        %828 = vmatpush1.bf16.msra.mxu0 0
        %829 = vmatprep.subr.bf16.mxu0 0
        %830 = vmatpush1.bf16.msra.mxu0 0
        %831 = vmatprep.subr.bf16.mxu0 0
        %832 = vmatpush1.bf16.msra.mxu0 0
        %833 = vmatprep.subr.bf16.mxu0 0
        %834 = vmatpush1.bf16.msra.mxu0 0
        %835 = vmatprep.subr.bf16.mxu0 %v433
        %836 = vmatpush1.bf16.msra.mxu0 %v430
        %837 = vmatprep.subr.bf16.mxu0 0
        %838 = vmatpush2.bf16.msra.mxu0 0
        %839 = vmatprep.subr.bf16.mxu0 0
        %840 = vmatpush2.bf16.msra.mxu0 0
        %841 = vmatprep.subr.bf16.mxu0 0
        %842 = vmatpush2.bf16.msra.mxu0 0
        %843 = vmatprep.subr.bf16.mxu0 0
        %844 = vmatpush2.bf16.msra.mxu0 0
        %845 = vmatprep.subr.bf16.mxu0 0
        %846 = vmatpush2.bf16.msra.mxu0 0
        %847 = vmatprep.subr.bf16.mxu0 0
        %848 = vmatpush2.bf16.msra.mxu0 0
        %849 = vmatprep.subr.bf16.mxu0 0
        %850 = vmatpush2.bf16.msra.mxu0 0
        %851 = vmatprep.subr.bf16.mxu0 0
        %852 = vmatpush2.bf16.msra.mxu0 0
        %853 = vmatprep.mubr.bf16.mxu0 0
        %854 = vmatmul.mubr.bf16.gmra.mxu0 %v378
        %v855 = vpop.f32.mrf.mxu0
        %v856 = vadd.f32 %v284, %v855
        %v857 = vpop.f32.mrf.mxu0
        %v858 = vadd.f32 %v284, %v857
        %v859 = vpop.f32.mrf.mxu0
        %v860 = vadd.f32 %v289, %v859
        %v861 = vpop.f32.mrf.mxu0
        %v862 = vadd.f32 %v289, %v861
        %863 = vdwg.mxu0
        %864 = vmatprep.subr.bf16.mxu0 0
        %865 = vmatpush1.bf16.msra.mxu0 0
        %866 = vmatprep.subr.bf16.mxu0 0
        %867 = vmatpush1.bf16.msra.mxu0 0
        %868 = vmatprep.subr.bf16.mxu0 0
        %869 = vmatpush1.bf16.msra.mxu0 0
        %870 = vmatprep.subr.bf16.mxu0 0
        %871 = vmatpush1.bf16.msra.mxu0 0
        %872 = vmatprep.subr.bf16.mxu0 0
        %873 = vmatpush1.bf16.msra.mxu0 0
        %874 = vmatprep.subr.bf16.mxu0 0
        %875 = vmatpush1.bf16.msra.mxu0 0
        %876 = vmatprep.subr.bf16.mxu0 0
        %877 = vmatpush1.bf16.msra.mxu0 0
        %878 = vmatprep.subr.bf16.mxu0 %v439
        %879 = vmatpush1.bf16.msra.mxu0 %v436
        %880 = vmatprep.subr.bf16.mxu0 0
        %881 = vmatpush2.bf16.msra.mxu0 0
        %882 = vmatprep.subr.bf16.mxu0 0
        %883 = vmatpush2.bf16.msra.mxu0 0
        %884 = vmatprep.subr.bf16.mxu0 0
        %885 = vmatpush2.bf16.msra.mxu0 0
        %886 = vmatprep.subr.bf16.mxu0 0
        %887 = vmatpush2.bf16.msra.mxu0 0
        %888 = vmatprep.subr.bf16.mxu0 0
        %889 = vmatpush2.bf16.msra.mxu0 0
        %890 = vmatprep.subr.bf16.mxu0 0
        %891 = vmatpush2.bf16.msra.mxu0 0
        %892 = vmatprep.subr.bf16.mxu0 0
        %893 = vmatpush2.bf16.msra.mxu0 0
        %894 = vmatprep.subr.bf16.mxu0 0
        %895 = vmatpush2.bf16.msra.mxu0 0
        %896 = vmatprep.mubr.bf16.mxu0 0
        %897 = vmatmul.mubr.bf16.gmra.mxu0 %v378
        %v898 = vpop.f32.mrf.mxu0
        %v899 = vadd.f32 %v284, %v898
        %v900 = vpop.f32.mrf.mxu0
        %v901 = vadd.f32 %v284, %v900
        %v902 = vpop.f32.mrf.mxu0
        %v903 = vadd.f32 %v289, %v902
        %v904 = vpop.f32.mrf.mxu0
        %v905 = vadd.f32 %v289, %v904
        %906 = vdwg.mxu0
        %907 = vmatprep.subr.bf16.mxu0 0
        %908 = vmatpush1.bf16.msra.mxu0 0
        %909 = vmatprep.subr.bf16.mxu0 0
        %910 = vmatpush1.bf16.msra.mxu0 0
        %911 = vmatprep.subr.bf16.mxu0 0
        %912 = vmatpush1.bf16.msra.mxu0 0
        %913 = vmatprep.subr.bf16.mxu0 0
        %914 = vmatpush1.bf16.msra.mxu0 0
        %915 = vmatprep.subr.bf16.mxu0 0
        %916 = vmatpush1.bf16.msra.mxu0 0
        %917 = vmatprep.subr.bf16.mxu0 0
        %918 = vmatpush1.bf16.msra.mxu0 0
        %919 = vmatprep.subr.bf16.mxu0 0
        %920 = vmatpush1.bf16.msra.mxu0 0
        %921 = vmatprep.subr.bf16.mxu0 %v445
        %922 = vmatpush1.bf16.msra.mxu0 %v442
        %923 = vmatprep.subr.bf16.mxu0 0
        %924 = vmatpush2.bf16.msra.mxu0 0
        %925 = vmatprep.subr.bf16.mxu0 0
        %926 = vmatpush2.bf16.msra.mxu0 0
        %927 = vmatprep.subr.bf16.mxu0 0
        %928 = vmatpush2.bf16.msra.mxu0 0
        %929 = vmatprep.subr.bf16.mxu0 0
        %930 = vmatpush2.bf16.msra.mxu0 0
        %931 = vmatprep.subr.bf16.mxu0 0
        %932 = vmatpush2.bf16.msra.mxu0 0
        %933 = vmatprep.subr.bf16.mxu0 0
        %934 = vmatpush2.bf16.msra.mxu0 0
        %935 = vmatprep.subr.bf16.mxu0 0
        %936 = vmatpush2.bf16.msra.mxu0 0
        %937 = vmatprep.subr.bf16.mxu0 0
        %938 = vmatpush2.bf16.msra.mxu0 0
        %939 = vmatprep.mubr.bf16.mxu0 0
        %940 = vmatmul.mubr.bf16.gmra.mxu0 %v378
        %v941 = vpop.f32.mrf.mxu0
        %v942 = vadd.f32 %v284, %v941
        %v943 = vpop.f32.mrf.mxu0
        %v944 = vadd.f32 %v284, %v943
        %v945 = vpop.f32.mrf.mxu0
        %v946 = vadd.f32 %v289, %v945
        %v947 = vpop.f32.mrf.mxu0
        %v948 = vadd.f32 %v289, %v947
        %949 = vdwg.mxu0
        %950 = vmatprep.subr.bf16.mxu0 0
        %951 = vmatpush1.bf16.msra.mxu0 0
        %952 = vmatprep.subr.bf16.mxu0 0
        %953 = vmatpush1.bf16.msra.mxu0 0
        %954 = vmatprep.subr.bf16.mxu0 0
        %955 = vmatpush1.bf16.msra.mxu0 0
        %956 = vmatprep.subr.bf16.mxu0 0
        %957 = vmatpush1.bf16.msra.mxu0 0
        %958 = vmatprep.subr.bf16.mxu0 0
        %959 = vmatpush1.bf16.msra.mxu0 0
        %960 = vmatprep.subr.bf16.mxu0 0
        %961 = vmatpush1.bf16.msra.mxu0 0
        %962 = vmatprep.subr.bf16.mxu0 0
        %963 = vmatpush1.bf16.msra.mxu0 0
        %964 = vmatprep.subr.bf16.mxu0 %v451
        %965 = vmatpush1.bf16.msra.mxu0 %v448
        %966 = vmatprep.subr.bf16.mxu0 0
        %967 = vmatpush2.bf16.msra.mxu0 0
        %968 = vmatprep.subr.bf16.mxu0 0
        %969 = vmatpush2.bf16.msra.mxu0 0
        %970 = vmatprep.subr.bf16.mxu0 0
        %971 = vmatpush2.bf16.msra.mxu0 0
        %972 = vmatprep.subr.bf16.mxu0 0
        %973 = vmatpush2.bf16.msra.mxu0 0
        %974 = vmatprep.subr.bf16.mxu0 0
        %975 = vmatpush2.bf16.msra.mxu0 0
        %976 = vmatprep.subr.bf16.mxu0 0
        %977 = vmatpush2.bf16.msra.mxu0 0
        %978 = vmatprep.subr.bf16.mxu0 0
        %979 = vmatpush2.bf16.msra.mxu0 0
        %980 = vmatprep.subr.bf16.mxu0 0
        %981 = vmatpush2.bf16.msra.mxu0 0
        %982 = vmatprep.mubr.bf16.mxu0 0
        %983 = vmatmul.mubr.bf16.gmra.mxu0 %v378
        %v984 = vpop.f32.mrf.mxu0
        %v985 = vadd.f32 %v284, %v984
        %v986 = vpop.f32.mrf.mxu0
        %v987 = vadd.f32 %v284, %v986
        %v988 = vpop.f32.mrf.mxu0
        %v989 = vadd.f32 %v289, %v988
        %v990 = vpop.f32.mrf.mxu0
        %v991 = vadd.f32 %v289, %v990
        %992 = vdwg.mxu0
        %993 = vmatprep.subr.bf16.mxu0 0
        %994 = vmatpush1.bf16.msra.mxu0 0
        %995 = vmatprep.subr.bf16.mxu0 0
        %996 = vmatpush1.bf16.msra.mxu0 0
        %997 = vmatprep.subr.bf16.mxu0 0
        %998 = vmatpush1.bf16.msra.mxu0 0
        %999 = vmatprep.subr.bf16.mxu0 0
        %1000 = vmatpush1.bf16.msra.mxu0 0
        %1001 = vmatprep.subr.bf16.mxu0 0
        %1002 = vmatpush1.bf16.msra.mxu0 0
        %1003 = vmatprep.subr.bf16.mxu0 0
        %1004 = vmatpush1.bf16.msra.mxu0 0
        %1005 = vmatprep.subr.bf16.mxu0 0
        %1006 = vmatpush1.bf16.msra.mxu0 0
        %1007 = vmatprep.subr.bf16.mxu0 %v457
        %1008 = vmatpush1.bf16.msra.mxu0 %v454
        %1009 = vmatprep.subr.bf16.mxu0 0
        %1010 = vmatpush2.bf16.msra.mxu0 0
        %1011 = vmatprep.subr.bf16.mxu0 0
        %1012 = vmatpush2.bf16.msra.mxu0 0
        %1013 = vmatprep.subr.bf16.mxu0 0
        %1014 = vmatpush2.bf16.msra.mxu0 0
        %1015 = vmatprep.subr.bf16.mxu0 0
        %1016 = vmatpush2.bf16.msra.mxu0 0
        %1017 = vmatprep.subr.bf16.mxu0 0
        %1018 = vmatpush2.bf16.msra.mxu0 0
        %1019 = vmatprep.subr.bf16.mxu0 0
        %1020 = vmatpush2.bf16.msra.mxu0 0
        %1021 = vmatprep.subr.bf16.mxu0 0
        %1022 = vmatpush2.bf16.msra.mxu0 0
        %1023 = vmatprep.subr.bf16.mxu0 0
        %1024 = vmatpush2.bf16.msra.mxu0 0
        %1025 = vmatprep.mubr.bf16.mxu0 0
        %1026 = vmatmul.mubr.bf16.gmra.mxu0 %v378
        %v1027 = vpop.f32.mrf.mxu0
        %v1028 = vadd.f32 %v284, %v1027
        %v1029 = vpop.f32.mrf.mxu0
        %v1030 = vadd.f32 %v284, %v1029
        %v1031 = vpop.f32.mrf.mxu0
        %v1032 = vadd.f32 %v289, %v1031
        %v1033 = vpop.f32.mrf.mxu0
        %v1034 = vadd.f32 %v289, %v1033
        %1035 = vdwg.mxu0
        %1036 = vmatprep.subr.bf16.mxu0 0
        %1037 = vmatpush1.bf16.msra.mxu0 0
        %1038 = vmatprep.subr.bf16.mxu0 0
        %1039 = vmatpush1.bf16.msra.mxu0 0
        %1040 = vmatprep.subr.bf16.mxu0 0
        %1041 = vmatpush1.bf16.msra.mxu0 0
        %1042 = vmatprep.subr.bf16.mxu0 0
        %1043 = vmatpush1.bf16.msra.mxu0 0
        %1044 = vmatprep.subr.bf16.mxu0 0
        %1045 = vmatpush1.bf16.msra.mxu0 0
        %1046 = vmatprep.subr.bf16.mxu0 0
        %1047 = vmatpush1.bf16.msra.mxu0 0
        %1048 = vmatprep.subr.bf16.mxu0 0
        %1049 = vmatpush1.bf16.msra.mxu0 0
        %1050 = vmatprep.subr.bf16.mxu0 %v463
        %1051 = vmatpush1.bf16.msra.mxu0 %v460
        %1052 = vmatprep.subr.bf16.mxu0 0
        %1053 = vmatpush2.bf16.msra.mxu0 0
        %1054 = vmatprep.subr.bf16.mxu0 0
        %1055 = vmatpush2.bf16.msra.mxu0 0
        %1056 = vmatprep.subr.bf16.mxu0 0
        %1057 = vmatpush2.bf16.msra.mxu0 0
        %1058 = vmatprep.subr.bf16.mxu0 0
        %1059 = vmatpush2.bf16.msra.mxu0 0
        %1060 = vmatprep.subr.bf16.mxu0 0
        %1061 = vmatpush2.bf16.msra.mxu0 0
        %1062 = vmatprep.subr.bf16.mxu0 0
        %1063 = vmatpush2.bf16.msra.mxu0 0
        %1064 = vmatprep.subr.bf16.mxu0 0
        %1065 = vmatpush2.bf16.msra.mxu0 0
        %1066 = vmatprep.subr.bf16.mxu0 0
        %1067 = vmatpush2.bf16.msra.mxu0 0
        %1068 = vmatprep.mubr.bf16.mxu0 0
        %1069 = vmatmul.mubr.bf16.gmra.mxu0 %v378
        %v1070 = vpop.f32.mrf.mxu0
        %v1071 = vadd.f32 %v284, %v1070
        %v1072 = vpop.f32.mrf.mxu0
        %v1073 = vadd.f32 %v284, %v1072
        %v1074 = vpop.f32.mrf.mxu0
        %v1075 = vadd.f32 %v289, %v1074
        %v1076 = vpop.f32.mrf.mxu0
        %v1077 = vadd.f32 %v289, %v1076
        %1078 = vdwg.mxu0
        %1079 = vmatprep.subr.bf16.mxu0 0
        %1080 = vmatpush1.bf16.msra.mxu0 0
        %1081 = vmatprep.subr.bf16.mxu0 0
        %1082 = vmatpush1.bf16.msra.mxu0 0
        %1083 = vmatprep.subr.bf16.mxu0 0
        %1084 = vmatpush1.bf16.msra.mxu0 0
        %1085 = vmatprep.subr.bf16.mxu0 0
        %1086 = vmatpush1.bf16.msra.mxu0 0
        %1087 = vmatprep.subr.bf16.mxu0 0
        %1088 = vmatpush1.bf16.msra.mxu0 0
        %1089 = vmatprep.subr.bf16.mxu0 0
        %1090 = vmatpush1.bf16.msra.mxu0 0
        %1091 = vmatprep.subr.bf16.mxu0 0
        %1092 = vmatpush1.bf16.msra.mxu0 0
        %1093 = vmatprep.subr.bf16.mxu0 %v469
        %1094 = vmatpush1.bf16.msra.mxu0 %v466
        %1095 = vmatprep.subr.bf16.mxu0 0
        %1096 = vmatpush2.bf16.msra.mxu0 0
        %1097 = vmatprep.subr.bf16.mxu0 0
        %1098 = vmatpush2.bf16.msra.mxu0 0
        %1099 = vmatprep.subr.bf16.mxu0 0
        %1100 = vmatpush2.bf16.msra.mxu0 0
        %1101 = vmatprep.subr.bf16.mxu0 0
        %1102 = vmatpush2.bf16.msra.mxu0 0
        %1103 = vmatprep.subr.bf16.mxu0 0
        %1104 = vmatpush2.bf16.msra.mxu0 0
        %1105 = vmatprep.subr.bf16.mxu0 0
        %1106 = vmatpush2.bf16.msra.mxu0 0
        %1107 = vmatprep.subr.bf16.mxu0 0
        %1108 = vmatpush2.bf16.msra.mxu0 0
        %1109 = vmatprep.subr.bf16.mxu0 0
        %1110 = vmatpush2.bf16.msra.mxu0 0
        %1111 = vmatprep.mubr.bf16.mxu0 0
        %1112 = vmatmul.mubr.bf16.gmra.mxu0 %v378
        %v1113 = vpop.f32.mrf.mxu0
        %v1114 = vadd.f32 %v284, %v1113
        %v1115 = vpop.f32.mrf.mxu0
        %v1116 = vadd.f32 %v284, %v1115
        %v1117 = vpop.f32.mrf.mxu0
        %v1118 = vadd.f32 %v289, %v1117
        %v1119 = vpop.f32.mrf.mxu0
        %v1120 = vadd.f32 %v289, %v1119
        %1121 = vdwg.mxu0
        %1122 = vmatprep.subr.bf16.mxu0 0
        %1123 = vmatpush1.bf16.msra.mxu0 0
        %1124 = vmatprep.subr.bf16.mxu0 0
        %1125 = vmatpush1.bf16.msra.mxu0 0
        %1126 = vmatprep.subr.bf16.mxu0 0
        %1127 = vmatpush1.bf16.msra.mxu0 0
        %1128 = vmatprep.subr.bf16.mxu0 0
        %1129 = vmatpush1.bf16.msra.mxu0 0
        %1130 = vmatprep.subr.bf16.mxu0 0
        %1131 = vmatpush1.bf16.msra.mxu0 0
        %1132 = vmatprep.subr.bf16.mxu0 0
        %1133 = vmatpush1.bf16.msra.mxu0 0
        %1134 = vmatprep.subr.bf16.mxu0 0
        %1135 = vmatpush1.bf16.msra.mxu0 0
        %1136 = vmatprep.subr.bf16.mxu0 %v475
        %1137 = vmatpush1.bf16.msra.mxu0 %v472
        %1138 = vmatprep.subr.bf16.mxu0 0
        %1139 = vmatpush2.bf16.msra.mxu0 0
        %1140 = vmatprep.subr.bf16.mxu0 0
        %1141 = vmatpush2.bf16.msra.mxu0 0
        %1142 = vmatprep.subr.bf16.mxu0 0
        %1143 = vmatpush2.bf16.msra.mxu0 0
        %1144 = vmatprep.subr.bf16.mxu0 0
        %1145 = vmatpush2.bf16.msra.mxu0 0
        %1146 = vmatprep.subr.bf16.mxu0 0
        %1147 = vmatpush2.bf16.msra.mxu0 0
        %1148 = vmatprep.subr.bf16.mxu0 0
        %1149 = vmatpush2.bf16.msra.mxu0 0
        %1150 = vmatprep.subr.bf16.mxu0 0
        %1151 = vmatpush2.bf16.msra.mxu0 0
        %1152 = vmatprep.subr.bf16.mxu0 0
        %1153 = vmatpush2.bf16.msra.mxu0 0
        %1154 = vmatprep.mubr.bf16.mxu0 0
        %1155 = vmatmul.mubr.bf16.gmra.mxu0 %v378
        %v1156 = vpop.f32.mrf.mxu0
        %v1157 = vadd.f32 %v284, %v1156
        %v1158 = vpop.f32.mrf.mxu0
        %v1159 = vadd.f32 %v284, %v1158
        %v1160 = vpop.f32.mrf.mxu0
        %v1161 = vadd.f32 %v289, %v1160
        %v1162 = vpop.f32.mrf.mxu0
        %v1163 = vadd.f32 %v289, %v1162
        %1164 = vdwg.mxu0
        %v1165 = vmax.f32 %v512, 0.0
        %v1166 = vmax.f32 %v514, 0.0
        %v1167 = vmax.f32 %v555, 0.0
        %v1168 = vmax.f32 %v557, 0.0
        %v1169 = vmax.f32 %v598, 0.0
        %v1170 = vmax.f32 %v600, 0.0
        %v1171 = vmax.f32 %v641, 0.0
        %v1172 = vmax.f32 %v643, 0.0
        %v1173 = vmax.f32 %v684, 0.0
        %v1174 = vmax.f32 %v686, 0.0
        %v1175 = vmax.f32 %v727, 0.0
        %v1176 = vmax.f32 %v729, 0.0
        %v1177 = vmax.f32 %v770, 0.0
        %v1178 = vmax.f32 %v772, 0.0
        %v1179 = vmax.f32 %v813, 0.0
        %v1180 = vmax.f32 %v815, 0.0
        %v1181 = vmax.f32 %v856, 0.0
        %v1182 = vmax.f32 %v858, 0.0
        %v1183 = vmax.f32 %v899, 0.0
        %v1184 = vmax.f32 %v901, 0.0
        %v1185 = vmax.f32 %v942, 0.0
        %v1186 = vmax.f32 %v944, 0.0
        %v1187 = vmax.f32 %v985, 0.0
        %v1188 = vmax.f32 %v987, 0.0
        %v1189 = vmax.f32 %v1028, 0.0
        %v1190 = vmax.f32 %v1030, 0.0
        %v1191 = vmax.f32 %v1071, 0.0
        %v1192 = vmax.f32 %v1073, 0.0
        %v1193 = vmax.f32 %v1114, 0.0
        %v1194 = vmax.f32 %v1116, 0.0
        %v1195 = vmax.f32 %v1157, 0.0
        %v1196 = vmax.f32 %v1159, 0.0
        %v1197 = vmax.f32 %v516, 0.0
        %v1198 = vmax.f32 %v518, 0.0
        %v1199 = vmax.f32 %v559, 0.0
        %v1200 = vmax.f32 %v561, 0.0
        %v1201 = vmax.f32 %v602, 0.0
        %v1202 = vmax.f32 %v604, 0.0
        %v1203 = vmax.f32 %v645, 0.0
        %v1204 = vmax.f32 %v647, 0.0
        %v1205 = vmax.f32 %v688, 0.0
        %v1206 = vmax.f32 %v690, 0.0
        %v1207 = vmax.f32 %v731, 0.0
        %v1208 = vmax.f32 %v733, 0.0
        %v1209 = vmax.f32 %v774, 0.0
        %v1210 = vmax.f32 %v776, 0.0
        %v1211 = vmax.f32 %v817, 0.0
        %v1212 = vmax.f32 %v819, 0.0
        %v1213 = vmax.f32 %v860, 0.0
        %v1214 = vmax.f32 %v862, 0.0
        %v1215 = vmax.f32 %v903, 0.0
        %v1216 = vmax.f32 %v905, 0.0
        %v1217 = vmax.f32 %v946, 0.0
        %v1218 = vmax.f32 %v948, 0.0
        %v1219 = vmax.f32 %v989, 0.0
        %v1220 = vmax.f32 %v991, 0.0
        %v1221 = vmax.f32 %v1032, 0.0
        %v1222 = vmax.f32 %v1034, 0.0
        %v1223 = vmax.f32 %v1075, 0.0
        %v1224 = vmax.f32 %v1077, 0.0
        %v1225 = vmax.f32 %v1118, 0.0
        %v1226 = vmax.f32 %v1120, 0.0
        %v1227 = vmax.f32 %v1161, 0.0
        %v1228 = vmax.f32 %v1163, 0.0
        %v1229 = vpack.c.bf16 %v1197, %v1165
        %v1230 = vpack.c.bf16 %v1198, %v1166
        %v1231 = vpack.c.bf16 %v1199, %v1167
        %v1232 = vpack.c.bf16 %v1200, %v1168
        %v1233 = vpack.c.bf16 %v1201, %v1169
        %v1234 = vpack.c.bf16 %v1202, %v1170
        %v1235 = vpack.c.bf16 %v1203, %v1171
        %v1236 = vpack.c.bf16 %v1204, %v1172
        %v1237 = vpack.c.bf16 %v1205, %v1173
        %v1238 = vpack.c.bf16 %v1206, %v1174
        %v1239 = vpack.c.bf16 %v1207, %v1175
        %v1240 = vpack.c.bf16 %v1208, %v1176
        %v1241 = vpack.c.bf16 %v1209, %v1177
        %v1242 = vpack.c.bf16 %v1210, %v1178
        %v1243 = vpack.c.bf16 %v1211, %v1179
        %v1244 = vpack.c.bf16 %v1212, %v1180
        %v1245 = vpack.c.bf16 %v1213, %v1181
        %v1246 = vpack.c.bf16 %v1214, %v1182
        %v1247 = vpack.c.bf16 %v1215, %v1183
        %v1248 = vpack.c.bf16 %v1216, %v1184
        %v1249 = vpack.c.bf16 %v1217, %v1185
        %v1250 = vpack.c.bf16 %v1218, %v1186
        %v1251 = vpack.c.bf16 %v1219, %v1187
        %v1252 = vpack.c.bf16 %v1220, %v1188
        %v1253 = vpack.c.bf16 %v1221, %v1189
        %v1254 = vpack.c.bf16 %v1222, %v1190
        %v1255 = vpack.c.bf16 %v1223, %v1191
        %v1256 = vpack.c.bf16 %v1224, %v1192
        %v1257 = vpack.c.bf16 %v1225, %v1193
        %v1258 = vpack.c.bf16 %v1226, %v1194
        %v1259 = vpack.c.bf16 %v1227, %v1195
        %v1260 = vpack.c.bf16 %v1228, %v1196
        %v1261 = vld [vmem:[%s3] sm:$0xf]
        %v1262 = vld [vmem:[%s3 + $0x4] sm:$0xf]
        %v1263 = vld [vmem:[%s3 + $0x8] sm:$0xf]
        %v1264 = vld [vmem:[%s3 + $0xc] sm:$0xf]
        %v1265 = vld [vmem:[%s4] sm:$0xff]
        %v1266 = vld [vmem:[%s4 + $0x8] sm:$0xff]
        %v1267 = vld [vmem:[%s4 + $0x10] sm:$0xff]
        %v1268 = vld [vmem:[%s4 + $0x18] sm:$0xff]
        %1270 = vset.pattern.permute.xlu0 0
        %1271 = vperm.xlu0 %1270, %v1265
        %v1272 = vpop.permute.xlu0 %1271
        %1275 = vset.pattern.permute.xlu0 0
        %1276 = vperm.xlu0 %1275, %v1266
        %v1277 = vpop.permute.xlu0 %1276
        %1280 = vset.pattern.permute.xlu0 0
        %1281 = vperm.xlu0 %1280, %v1267
        %v1282 = vpop.permute.xlu0 %1281
        %1285 = vset.pattern.permute.xlu0 0
        %1286 = vperm.xlu0 %1285, %v1268
        %v1287 = vpop.permute.xlu0 %1286
        %v1293 = vunpack.c.l.b16 %v1261
        %v1294 = vunpack.c.l.b16 %v1262
        %v1295 = vunpack.c.l.b16 %v1263
        %v1296 = vunpack.c.l.b16 %v1264
        %v1297 = vpack.c.b16 %v1294, %v1293
        %v1298 = vpack.c.b16 %v1296, %v1295
        %vm1299 = vcmask 130048
        %v1301 = vsel %vm1299, %v1297, 0
        %v1304 = vsel %vm1299, %v1298, 0
        %1306 = vmatprep.subr.bf16.mxu0 0
        %1307 = vmatpush1.bf16.msra.mxu0 0
        %1308 = vmatprep.subr.bf16.mxu0 0
        %1309 = vmatpush1.bf16.msra.mxu0 0
        %1310 = vmatprep.subr.bf16.mxu0 0
        %1311 = vmatpush1.bf16.msra.mxu0 0
        %1312 = vmatprep.subr.bf16.mxu0 0
        %1313 = vmatpush1.bf16.msra.mxu0 0
        %1314 = vmatprep.subr.bf16.mxu0 0
        %1315 = vmatpush1.bf16.msra.mxu0 0
        %1316 = vmatprep.subr.bf16.mxu0 0
        %1317 = vmatpush1.bf16.msra.mxu0 0
        %1318 = vmatprep.subr.bf16.mxu0 0
        %1319 = vmatpush1.bf16.msra.mxu0 0
        %1320 = vmatprep.subr.bf16.mxu0 %v1230
        %1321 = vmatpush1.bf16.msra.mxu0 %v1229
        %1322 = vmatprep.subr.bf16.mxu0 0
        %1323 = vmatpush2.bf16.msra.mxu0 0
        %1324 = vmatprep.subr.bf16.mxu0 0
        %1325 = vmatpush2.bf16.msra.mxu0 0
        %1326 = vmatprep.subr.bf16.mxu0 0
        %1327 = vmatpush2.bf16.msra.mxu0 0
        %1328 = vmatprep.subr.bf16.mxu0 0
        %1329 = vmatpush2.bf16.msra.mxu0 0
        %1330 = vmatprep.subr.bf16.mxu0 0
        %1331 = vmatpush2.bf16.msra.mxu0 0
        %1332 = vmatprep.subr.bf16.mxu0 0
        %1333 = vmatpush2.bf16.msra.mxu0 0
        %1334 = vmatprep.subr.bf16.mxu0 0
        %1335 = vmatpush2.bf16.msra.mxu0 0
        %1336 = vmatprep.subr.bf16.mxu0 0
        %1337 = vmatpush2.bf16.msra.mxu0 0
        %1338 = vmatprep.mubr.bf16.mxu0 0
        %1339 = vmatmul.mubr.bf16.gmra.mxu0 %v1301
        %v1340 = vpop.f32.mrf.mxu0
        %v1341 = vadd.f32 %v1272, %v1340
        %v1342 = vpop.f32.mrf.mxu0
        %v1343 = vadd.f32 %v1272, %v1342
        %v1344 = vpop.f32.mrf.mxu0
        %v1345 = vadd.f32 %v1277, %v1344
        %v1346 = vpop.f32.mrf.mxu0
        %v1347 = vadd.f32 %v1277, %v1346
        %1348 = vmatprep.mubr.bf16.mxu0 0
        %1349 = vmatmul.mubr.bf16.gmra.mxu0 %v1304
        %v1350 = vpop.f32.mrf.mxu0
        %v1351 = vadd.f32 %v1282, %v1350
        %v1352 = vpop.f32.mrf.mxu0
        %v1353 = vadd.f32 %v1282, %v1352
        %v1354 = vpop.f32.mrf.mxu0
        %v1355 = vadd.f32 %v1287, %v1354
        %v1356 = vpop.f32.mrf.mxu0
        %v1357 = vadd.f32 %v1287, %v1356
        %1358 = vdwg.mxu0
        %1359 = vmatprep.subr.bf16.mxu0 0
        %1360 = vmatpush1.bf16.msra.mxu0 0
        %1361 = vmatprep.subr.bf16.mxu0 0
        %1362 = vmatpush1.bf16.msra.mxu0 0
        %1363 = vmatprep.subr.bf16.mxu0 0
        %1364 = vmatpush1.bf16.msra.mxu0 0
        %1365 = vmatprep.subr.bf16.mxu0 0
        %1366 = vmatpush1.bf16.msra.mxu0 0
        %1367 = vmatprep.subr.bf16.mxu0 0
        %1368 = vmatpush1.bf16.msra.mxu0 0
        %1369 = vmatprep.subr.bf16.mxu0 0
        %1370 = vmatpush1.bf16.msra.mxu0 0
        %1371 = vmatprep.subr.bf16.mxu0 0
        %1372 = vmatpush1.bf16.msra.mxu0 0
        %1373 = vmatprep.subr.bf16.mxu0 %v1232
        %1374 = vmatpush1.bf16.msra.mxu0 %v1231
        %1375 = vmatprep.subr.bf16.mxu0 0
        %1376 = vmatpush2.bf16.msra.mxu0 0
        %1377 = vmatprep.subr.bf16.mxu0 0
        %1378 = vmatpush2.bf16.msra.mxu0 0
        %1379 = vmatprep.subr.bf16.mxu0 0
        %1380 = vmatpush2.bf16.msra.mxu0 0
        %1381 = vmatprep.subr.bf16.mxu0 0
        %1382 = vmatpush2.bf16.msra.mxu0 0
        %1383 = vmatprep.subr.bf16.mxu0 0
        %1384 = vmatpush2.bf16.msra.mxu0 0
        %1385 = vmatprep.subr.bf16.mxu0 0
        %1386 = vmatpush2.bf16.msra.mxu0 0
        %1387 = vmatprep.subr.bf16.mxu0 0
        %1388 = vmatpush2.bf16.msra.mxu0 0
        %1389 = vmatprep.subr.bf16.mxu0 0
        %1390 = vmatpush2.bf16.msra.mxu0 0
        %1391 = vmatprep.mubr.bf16.mxu0 0
        %1392 = vmatmul.mubr.bf16.gmra.mxu0 %v1301
        %v1393 = vpop.f32.mrf.mxu0
        %v1394 = vadd.f32 %v1272, %v1393
        %v1395 = vpop.f32.mrf.mxu0
        %v1396 = vadd.f32 %v1272, %v1395
        %v1397 = vpop.f32.mrf.mxu0
        %v1398 = vadd.f32 %v1277, %v1397
        %v1399 = vpop.f32.mrf.mxu0
        %v1400 = vadd.f32 %v1277, %v1399
        %1401 = vmatprep.mubr.bf16.mxu0 0
        %1402 = vmatmul.mubr.bf16.gmra.mxu0 %v1304
        %v1403 = vpop.f32.mrf.mxu0
        %v1404 = vadd.f32 %v1282, %v1403
        %v1405 = vpop.f32.mrf.mxu0
        %v1406 = vadd.f32 %v1282, %v1405
        %v1407 = vpop.f32.mrf.mxu0
        %v1408 = vadd.f32 %v1287, %v1407
        %v1409 = vpop.f32.mrf.mxu0
        %v1410 = vadd.f32 %v1287, %v1409
        %1411 = vdwg.mxu0
        %1412 = vmatprep.subr.bf16.mxu0 0
        %1413 = vmatpush1.bf16.msra.mxu0 0
        %1414 = vmatprep.subr.bf16.mxu0 0
        %1415 = vmatpush1.bf16.msra.mxu0 0
        %1416 = vmatprep.subr.bf16.mxu0 0
        %1417 = vmatpush1.bf16.msra.mxu0 0
        %1418 = vmatprep.subr.bf16.mxu0 0
        %1419 = vmatpush1.bf16.msra.mxu0 0
        %1420 = vmatprep.subr.bf16.mxu0 0
        %1421 = vmatpush1.bf16.msra.mxu0 0
        %1422 = vmatprep.subr.bf16.mxu0 0
        %1423 = vmatpush1.bf16.msra.mxu0 0
        %1424 = vmatprep.subr.bf16.mxu0 0
        %1425 = vmatpush1.bf16.msra.mxu0 0
        %1426 = vmatprep.subr.bf16.mxu0 %v1234
        %1427 = vmatpush1.bf16.msra.mxu0 %v1233
        %1428 = vmatprep.subr.bf16.mxu0 0
        %1429 = vmatpush2.bf16.msra.mxu0 0
        %1430 = vmatprep.subr.bf16.mxu0 0
        %1431 = vmatpush2.bf16.msra.mxu0 0
        %1432 = vmatprep.subr.bf16.mxu0 0
        %1433 = vmatpush2.bf16.msra.mxu0 0
        %1434 = vmatprep.subr.bf16.mxu0 0
        %1435 = vmatpush2.bf16.msra.mxu0 0
        %1436 = vmatprep.subr.bf16.mxu0 0
        %1437 = vmatpush2.bf16.msra.mxu0 0
        %1438 = vmatprep.subr.bf16.mxu0 0
        %1439 = vmatpush2.bf16.msra.mxu0 0
        %1440 = vmatprep.subr.bf16.mxu0 0
        %1441 = vmatpush2.bf16.msra.mxu0 0
        %1442 = vmatprep.subr.bf16.mxu0 0
        %1443 = vmatpush2.bf16.msra.mxu0 0
        %1444 = vmatprep.mubr.bf16.mxu0 0
        %1445 = vmatmul.mubr.bf16.gmra.mxu0 %v1301
        %v1446 = vpop.f32.mrf.mxu0
        %v1447 = vadd.f32 %v1272, %v1446
        %v1448 = vpop.f32.mrf.mxu0
        %v1449 = vadd.f32 %v1272, %v1448
        %v1450 = vpop.f32.mrf.mxu0
        %v1451 = vadd.f32 %v1277, %v1450
        %v1452 = vpop.f32.mrf.mxu0
        %v1453 = vadd.f32 %v1277, %v1452
        %1454 = vmatprep.mubr.bf16.mxu0 0
        %1455 = vmatmul.mubr.bf16.gmra.mxu0 %v1304
        %v1456 = vpop.f32.mrf.mxu0
        %v1457 = vadd.f32 %v1282, %v1456
        %v1458 = vpop.f32.mrf.mxu0
        %v1459 = vadd.f32 %v1282, %v1458
        %v1460 = vpop.f32.mrf.mxu0
        %v1461 = vadd.f32 %v1287, %v1460
        %v1462 = vpop.f32.mrf.mxu0
        %v1463 = vadd.f32 %v1287, %v1462
        %1464 = vdwg.mxu0
        %1465 = vmatprep.subr.bf16.mxu0 0
        %1466 = vmatpush1.bf16.msra.mxu0 0
        %1467 = vmatprep.subr.bf16.mxu0 0
        %1468 = vmatpush1.bf16.msra.mxu0 0
        %1469 = vmatprep.subr.bf16.mxu0 0
        %1470 = vmatpush1.bf16.msra.mxu0 0
        %1471 = vmatprep.subr.bf16.mxu0 0
        %1472 = vmatpush1.bf16.msra.mxu0 0
        %1473 = vmatprep.subr.bf16.mxu0 0
        %1474 = vmatpush1.bf16.msra.mxu0 0
        %1475 = vmatprep.subr.bf16.mxu0 0
        %1476 = vmatpush1.bf16.msra.mxu0 0
        %1477 = vmatprep.subr.bf16.mxu0 0
        %1478 = vmatpush1.bf16.msra.mxu0 0
        %1479 = vmatprep.subr.bf16.mxu0 %v1236
        %1480 = vmatpush1.bf16.msra.mxu0 %v1235
        %1481 = vmatprep.subr.bf16.mxu0 0
        %1482 = vmatpush2.bf16.msra.mxu0 0
        %1483 = vmatprep.subr.bf16.mxu0 0
        %1484 = vmatpush2.bf16.msra.mxu0 0
        %1485 = vmatprep.subr.bf16.mxu0 0
        %1486 = vmatpush2.bf16.msra.mxu0 0
        %1487 = vmatprep.subr.bf16.mxu0 0
        %1488 = vmatpush2.bf16.msra.mxu0 0
        %1489 = vmatprep.subr.bf16.mxu0 0
        %1490 = vmatpush2.bf16.msra.mxu0 0
        %1491 = vmatprep.subr.bf16.mxu0 0
        %1492 = vmatpush2.bf16.msra.mxu0 0
        %1493 = vmatprep.subr.bf16.mxu0 0
        %1494 = vmatpush2.bf16.msra.mxu0 0
        %1495 = vmatprep.subr.bf16.mxu0 0
        %1496 = vmatpush2.bf16.msra.mxu0 0
        %1497 = vmatprep.mubr.bf16.mxu0 0
        %1498 = vmatmul.mubr.bf16.gmra.mxu0 %v1301
        %v1499 = vpop.f32.mrf.mxu0
        %v1500 = vadd.f32 %v1272, %v1499
        %v1501 = vpop.f32.mrf.mxu0
        %v1502 = vadd.f32 %v1272, %v1501
        %v1503 = vpop.f32.mrf.mxu0
        %v1504 = vadd.f32 %v1277, %v1503
        %v1505 = vpop.f32.mrf.mxu0
        %v1506 = vadd.f32 %v1277, %v1505
        %1507 = vmatprep.mubr.bf16.mxu0 0
        %1508 = vmatmul.mubr.bf16.gmra.mxu0 %v1304
        %v1509 = vpop.f32.mrf.mxu0
        %v1510 = vadd.f32 %v1282, %v1509
        %v1511 = vpop.f32.mrf.mxu0
        %v1512 = vadd.f32 %v1282, %v1511
        %v1513 = vpop.f32.mrf.mxu0
        %v1514 = vadd.f32 %v1287, %v1513
        %v1515 = vpop.f32.mrf.mxu0
        %v1516 = vadd.f32 %v1287, %v1515
        %1517 = vdwg.mxu0
        %1518 = vmatprep.subr.bf16.mxu0 0
        %1519 = vmatpush1.bf16.msra.mxu0 0
        %1520 = vmatprep.subr.bf16.mxu0 0
        %1521 = vmatpush1.bf16.msra.mxu0 0
        %1522 = vmatprep.subr.bf16.mxu0 0
        %1523 = vmatpush1.bf16.msra.mxu0 0
        %1524 = vmatprep.subr.bf16.mxu0 0
        %1525 = vmatpush1.bf16.msra.mxu0 0
        %1526 = vmatprep.subr.bf16.mxu0 0
        %1527 = vmatpush1.bf16.msra.mxu0 0
        %1528 = vmatprep.subr.bf16.mxu0 0
        %1529 = vmatpush1.bf16.msra.mxu0 0
        %1530 = vmatprep.subr.bf16.mxu0 0
        %1531 = vmatpush1.bf16.msra.mxu0 0
        %1532 = vmatprep.subr.bf16.mxu0 %v1238
        %1533 = vmatpush1.bf16.msra.mxu0 %v1237
        %1534 = vmatprep.subr.bf16.mxu0 0
        %1535 = vmatpush2.bf16.msra.mxu0 0
        %1536 = vmatprep.subr.bf16.mxu0 0
        %1537 = vmatpush2.bf16.msra.mxu0 0
        %1538 = vmatprep.subr.bf16.mxu0 0
        %1539 = vmatpush2.bf16.msra.mxu0 0
        %1540 = vmatprep.subr.bf16.mxu0 0
        %1541 = vmatpush2.bf16.msra.mxu0 0
        %1542 = vmatprep.subr.bf16.mxu0 0
        %1543 = vmatpush2.bf16.msra.mxu0 0
        %1544 = vmatprep.subr.bf16.mxu0 0
        %1545 = vmatpush2.bf16.msra.mxu0 0
        %1546 = vmatprep.subr.bf16.mxu0 0
        %1547 = vmatpush2.bf16.msra.mxu0 0
        %1548 = vmatprep.subr.bf16.mxu0 0
        %1549 = vmatpush2.bf16.msra.mxu0 0
        %1550 = vmatprep.mubr.bf16.mxu0 0
        %1551 = vmatmul.mubr.bf16.gmra.mxu0 %v1301
        %v1552 = vpop.f32.mrf.mxu0
        %v1553 = vadd.f32 %v1272, %v1552
        %v1554 = vpop.f32.mrf.mxu0
        %v1555 = vadd.f32 %v1272, %v1554
        %v1556 = vpop.f32.mrf.mxu0
        %v1557 = vadd.f32 %v1277, %v1556
        %v1558 = vpop.f32.mrf.mxu0
        %v1559 = vadd.f32 %v1277, %v1558
        %1560 = vmatprep.mubr.bf16.mxu0 0
        %1561 = vmatmul.mubr.bf16.gmra.mxu0 %v1304
        %v1562 = vpop.f32.mrf.mxu0
        %v1563 = vadd.f32 %v1282, %v1562
        %v1564 = vpop.f32.mrf.mxu0
        %v1565 = vadd.f32 %v1282, %v1564
        %v1566 = vpop.f32.mrf.mxu0
        %v1567 = vadd.f32 %v1287, %v1566
        %v1568 = vpop.f32.mrf.mxu0
        %v1569 = vadd.f32 %v1287, %v1568
        %1570 = vdwg.mxu0
        %1571 = vmatprep.subr.bf16.mxu0 0
        %1572 = vmatpush1.bf16.msra.mxu0 0
        %1573 = vmatprep.subr.bf16.mxu0 0
        %1574 = vmatpush1.bf16.msra.mxu0 0
        %1575 = vmatprep.subr.bf16.mxu0 0
        %1576 = vmatpush1.bf16.msra.mxu0 0
        %1577 = vmatprep.subr.bf16.mxu0 0
        %1578 = vmatpush1.bf16.msra.mxu0 0
        %1579 = vmatprep.subr.bf16.mxu0 0
        %1580 = vmatpush1.bf16.msra.mxu0 0
        %1581 = vmatprep.subr.bf16.mxu0 0
        %1582 = vmatpush1.bf16.msra.mxu0 0
        %1583 = vmatprep.subr.bf16.mxu0 0
        %1584 = vmatpush1.bf16.msra.mxu0 0
        %1585 = vmatprep.subr.bf16.mxu0 %v1240
        %1586 = vmatpush1.bf16.msra.mxu0 %v1239
        %1587 = vmatprep.subr.bf16.mxu0 0
        %1588 = vmatpush2.bf16.msra.mxu0 0
        %1589 = vmatprep.subr.bf16.mxu0 0
        %1590 = vmatpush2.bf16.msra.mxu0 0
        %1591 = vmatprep.subr.bf16.mxu0 0
        %1592 = vmatpush2.bf16.msra.mxu0 0
        %1593 = vmatprep.subr.bf16.mxu0 0
        %1594 = vmatpush2.bf16.msra.mxu0 0
        %1595 = vmatprep.subr.bf16.mxu0 0
        %1596 = vmatpush2.bf16.msra.mxu0 0
        %1597 = vmatprep.subr.bf16.mxu0 0
        %1598 = vmatpush2.bf16.msra.mxu0 0
        %1599 = vmatprep.subr.bf16.mxu0 0
        %1600 = vmatpush2.bf16.msra.mxu0 0
        %1601 = vmatprep.subr.bf16.mxu0 0
        %1602 = vmatpush2.bf16.msra.mxu0 0
        %1603 = vmatprep.mubr.bf16.mxu0 0
        %1604 = vmatmul.mubr.bf16.gmra.mxu0 %v1301
        %v1605 = vpop.f32.mrf.mxu0
        %v1606 = vadd.f32 %v1272, %v1605
        %v1607 = vpop.f32.mrf.mxu0
        %v1608 = vadd.f32 %v1272, %v1607
        %v1609 = vpop.f32.mrf.mxu0
        %v1610 = vadd.f32 %v1277, %v1609
        %v1611 = vpop.f32.mrf.mxu0
        %v1612 = vadd.f32 %v1277, %v1611
        %1613 = vmatprep.mubr.bf16.mxu0 0
        %1614 = vmatmul.mubr.bf16.gmra.mxu0 %v1304
        %v1615 = vpop.f32.mrf.mxu0
        %v1616 = vadd.f32 %v1282, %v1615
        %v1617 = vpop.f32.mrf.mxu0
        %v1618 = vadd.f32 %v1282, %v1617
        %v1619 = vpop.f32.mrf.mxu0
        %v1620 = vadd.f32 %v1287, %v1619
        %v1621 = vpop.f32.mrf.mxu0
        %v1622 = vadd.f32 %v1287, %v1621
        %1623 = vdwg.mxu0
        %1624 = vmatprep.subr.bf16.mxu0 0
        %1625 = vmatpush1.bf16.msra.mxu0 0
        %1626 = vmatprep.subr.bf16.mxu0 0
        %1627 = vmatpush1.bf16.msra.mxu0 0
        %1628 = vmatprep.subr.bf16.mxu0 0
        %1629 = vmatpush1.bf16.msra.mxu0 0
        %1630 = vmatprep.subr.bf16.mxu0 0
        %1631 = vmatpush1.bf16.msra.mxu0 0
        %1632 = vmatprep.subr.bf16.mxu0 0
        %1633 = vmatpush1.bf16.msra.mxu0 0
        %1634 = vmatprep.subr.bf16.mxu0 0
        %1635 = vmatpush1.bf16.msra.mxu0 0
        %1636 = vmatprep.subr.bf16.mxu0 0
        %1637 = vmatpush1.bf16.msra.mxu0 0
        %1638 = vmatprep.subr.bf16.mxu0 %v1242
        %1639 = vmatpush1.bf16.msra.mxu0 %v1241
        %1640 = vmatprep.subr.bf16.mxu0 0
        %1641 = vmatpush2.bf16.msra.mxu0 0
        %1642 = vmatprep.subr.bf16.mxu0 0
        %1643 = vmatpush2.bf16.msra.mxu0 0
        %1644 = vmatprep.subr.bf16.mxu0 0
        %1645 = vmatpush2.bf16.msra.mxu0 0
        %1646 = vmatprep.subr.bf16.mxu0 0
        %1647 = vmatpush2.bf16.msra.mxu0 0
        %1648 = vmatprep.subr.bf16.mxu0 0
        %1649 = vmatpush2.bf16.msra.mxu0 0
        %1650 = vmatprep.subr.bf16.mxu0 0
        %1651 = vmatpush2.bf16.msra.mxu0 0
        %1652 = vmatprep.subr.bf16.mxu0 0
        %1653 = vmatpush2.bf16.msra.mxu0 0
        %1654 = vmatprep.subr.bf16.mxu0 0
        %1655 = vmatpush2.bf16.msra.mxu0 0
        %1656 = vmatprep.mubr.bf16.mxu0 0
        %1657 = vmatmul.mubr.bf16.gmra.mxu0 %v1301
        %v1658 = vpop.f32.mrf.mxu0
        %v1659 = vadd.f32 %v1272, %v1658
        %v1660 = vpop.f32.mrf.mxu0
        %v1661 = vadd.f32 %v1272, %v1660
        %v1662 = vpop.f32.mrf.mxu0
        %v1663 = vadd.f32 %v1277, %v1662
        %v1664 = vpop.f32.mrf.mxu0
        %v1665 = vadd.f32 %v1277, %v1664
        %1666 = vmatprep.mubr.bf16.mxu0 0
        %1667 = vmatmul.mubr.bf16.gmra.mxu0 %v1304
        %v1668 = vpop.f32.mrf.mxu0
        %v1669 = vadd.f32 %v1282, %v1668
        %v1670 = vpop.f32.mrf.mxu0
        %v1671 = vadd.f32 %v1282, %v1670
        %v1672 = vpop.f32.mrf.mxu0
        %v1673 = vadd.f32 %v1287, %v1672
        %v1674 = vpop.f32.mrf.mxu0
        %v1675 = vadd.f32 %v1287, %v1674
        %1676 = vdwg.mxu0
        %1677 = vmatprep.subr.bf16.mxu0 0
        %1678 = vmatpush1.bf16.msra.mxu0 0
        %1679 = vmatprep.subr.bf16.mxu0 0
        %1680 = vmatpush1.bf16.msra.mxu0 0
        %1681 = vmatprep.subr.bf16.mxu0 0
        %1682 = vmatpush1.bf16.msra.mxu0 0
        %1683 = vmatprep.subr.bf16.mxu0 0
        %1684 = vmatpush1.bf16.msra.mxu0 0
        %1685 = vmatprep.subr.bf16.mxu0 0
        %1686 = vmatpush1.bf16.msra.mxu0 0
        %1687 = vmatprep.subr.bf16.mxu0 0
        %1688 = vmatpush1.bf16.msra.mxu0 0
        %1689 = vmatprep.subr.bf16.mxu0 0
        %1690 = vmatpush1.bf16.msra.mxu0 0
        %1691 = vmatprep.subr.bf16.mxu0 %v1244
        %1692 = vmatpush1.bf16.msra.mxu0 %v1243
        %1693 = vmatprep.subr.bf16.mxu0 0
        %1694 = vmatpush2.bf16.msra.mxu0 0
        %1695 = vmatprep.subr.bf16.mxu0 0
        %1696 = vmatpush2.bf16.msra.mxu0 0
        %1697 = vmatprep.subr.bf16.mxu0 0
        %1698 = vmatpush2.bf16.msra.mxu0 0
        %1699 = vmatprep.subr.bf16.mxu0 0
        %1700 = vmatpush2.bf16.msra.mxu0 0
        %1701 = vmatprep.subr.bf16.mxu0 0
        %1702 = vmatpush2.bf16.msra.mxu0 0
        %1703 = vmatprep.subr.bf16.mxu0 0
        %1704 = vmatpush2.bf16.msra.mxu0 0
        %1705 = vmatprep.subr.bf16.mxu0 0
        %1706 = vmatpush2.bf16.msra.mxu0 0
        %1707 = vmatprep.subr.bf16.mxu0 0
        %1708 = vmatpush2.bf16.msra.mxu0 0
        %1709 = vmatprep.mubr.bf16.mxu0 0
        %1710 = vmatmul.mubr.bf16.gmra.mxu0 %v1301
        %v1711 = vpop.f32.mrf.mxu0
        %v1712 = vadd.f32 %v1272, %v1711
        %v1713 = vpop.f32.mrf.mxu0
        %v1714 = vadd.f32 %v1272, %v1713
        %v1715 = vpop.f32.mrf.mxu0
        %v1716 = vadd.f32 %v1277, %v1715
        %v1717 = vpop.f32.mrf.mxu0
        %v1718 = vadd.f32 %v1277, %v1717
        %1719 = vmatprep.mubr.bf16.mxu0 0
        %1720 = vmatmul.mubr.bf16.gmra.mxu0 %v1304
        %v1721 = vpop.f32.mrf.mxu0
        %v1722 = vadd.f32 %v1282, %v1721
        %v1723 = vpop.f32.mrf.mxu0
        %v1724 = vadd.f32 %v1282, %v1723
        %v1725 = vpop.f32.mrf.mxu0
        %v1726 = vadd.f32 %v1287, %v1725
        %v1727 = vpop.f32.mrf.mxu0
        %v1728 = vadd.f32 %v1287, %v1727
        %1729 = vdwg.mxu0
        %1730 = vmatprep.subr.bf16.mxu0 0
        %1731 = vmatpush1.bf16.msra.mxu0 0
        %1732 = vmatprep.subr.bf16.mxu0 0
        %1733 = vmatpush1.bf16.msra.mxu0 0
        %1734 = vmatprep.subr.bf16.mxu0 0
        %1735 = vmatpush1.bf16.msra.mxu0 0
        %1736 = vmatprep.subr.bf16.mxu0 0
        %1737 = vmatpush1.bf16.msra.mxu0 0
        %1738 = vmatprep.subr.bf16.mxu0 0
        %1739 = vmatpush1.bf16.msra.mxu0 0
        %1740 = vmatprep.subr.bf16.mxu0 0
        %1741 = vmatpush1.bf16.msra.mxu0 0
        %1742 = vmatprep.subr.bf16.mxu0 0
        %1743 = vmatpush1.bf16.msra.mxu0 0
        %1744 = vmatprep.subr.bf16.mxu0 %v1246
        %1745 = vmatpush1.bf16.msra.mxu0 %v1245
        %1746 = vmatprep.subr.bf16.mxu0 0
        %1747 = vmatpush2.bf16.msra.mxu0 0
        %1748 = vmatprep.subr.bf16.mxu0 0
        %1749 = vmatpush2.bf16.msra.mxu0 0
        %1750 = vmatprep.subr.bf16.mxu0 0
        %1751 = vmatpush2.bf16.msra.mxu0 0
        %1752 = vmatprep.subr.bf16.mxu0 0
        %1753 = vmatpush2.bf16.msra.mxu0 0
        %1754 = vmatprep.subr.bf16.mxu0 0
        %1755 = vmatpush2.bf16.msra.mxu0 0
        %1756 = vmatprep.subr.bf16.mxu0 0
        %1757 = vmatpush2.bf16.msra.mxu0 0
        %1758 = vmatprep.subr.bf16.mxu0 0
        %1759 = vmatpush2.bf16.msra.mxu0 0
        %1760 = vmatprep.subr.bf16.mxu0 0
        %1761 = vmatpush2.bf16.msra.mxu0 0
        %1762 = vmatprep.mubr.bf16.mxu0 0
        %1763 = vmatmul.mubr.bf16.gmra.mxu0 %v1301
        %v1764 = vpop.f32.mrf.mxu0
        %v1765 = vadd.f32 %v1272, %v1764
        %v1766 = vpop.f32.mrf.mxu0
        %v1767 = vadd.f32 %v1272, %v1766
        %v1768 = vpop.f32.mrf.mxu0
        %v1769 = vadd.f32 %v1277, %v1768
        %v1770 = vpop.f32.mrf.mxu0
        %v1771 = vadd.f32 %v1277, %v1770
        %1772 = vmatprep.mubr.bf16.mxu0 0
        %1773 = vmatmul.mubr.bf16.gmra.mxu0 %v1304
        %v1774 = vpop.f32.mrf.mxu0
        %v1775 = vadd.f32 %v1282, %v1774
        %v1776 = vpop.f32.mrf.mxu0
        %v1777 = vadd.f32 %v1282, %v1776
        %v1778 = vpop.f32.mrf.mxu0
        %v1779 = vadd.f32 %v1287, %v1778
        %v1780 = vpop.f32.mrf.mxu0
        %v1781 = vadd.f32 %v1287, %v1780
        %1782 = vdwg.mxu0
        %1783 = vmatprep.subr.bf16.mxu0 0
        %1784 = vmatpush1.bf16.msra.mxu0 0
        %1785 = vmatprep.subr.bf16.mxu0 0
        %1786 = vmatpush1.bf16.msra.mxu0 0
        %1787 = vmatprep.subr.bf16.mxu0 0
        %1788 = vmatpush1.bf16.msra.mxu0 0
        %1789 = vmatprep.subr.bf16.mxu0 0
        %1790 = vmatpush1.bf16.msra.mxu0 0
        %1791 = vmatprep.subr.bf16.mxu0 0
        %1792 = vmatpush1.bf16.msra.mxu0 0
        %1793 = vmatprep.subr.bf16.mxu0 0
        %1794 = vmatpush1.bf16.msra.mxu0 0
        %1795 = vmatprep.subr.bf16.mxu0 0
        %1796 = vmatpush1.bf16.msra.mxu0 0
        %1797 = vmatprep.subr.bf16.mxu0 %v1248
        %1798 = vmatpush1.bf16.msra.mxu0 %v1247
        %1799 = vmatprep.subr.bf16.mxu0 0
        %1800 = vmatpush2.bf16.msra.mxu0 0
        %1801 = vmatprep.subr.bf16.mxu0 0
        %1802 = vmatpush2.bf16.msra.mxu0 0
        %1803 = vmatprep.subr.bf16.mxu0 0
        %1804 = vmatpush2.bf16.msra.mxu0 0
        %1805 = vmatprep.subr.bf16.mxu0 0
        %1806 = vmatpush2.bf16.msra.mxu0 0
        %1807 = vmatprep.subr.bf16.mxu0 0
        %1808 = vmatpush2.bf16.msra.mxu0 0
        %1809 = vmatprep.subr.bf16.mxu0 0
        %1810 = vmatpush2.bf16.msra.mxu0 0
        %1811 = vmatprep.subr.bf16.mxu0 0
        %1812 = vmatpush2.bf16.msra.mxu0 0
        %1813 = vmatprep.subr.bf16.mxu0 0
        %1814 = vmatpush2.bf16.msra.mxu0 0
        %1815 = vmatprep.mubr.bf16.mxu0 0
        %1816 = vmatmul.mubr.bf16.gmra.mxu0 %v1301
        %v1817 = vpop.f32.mrf.mxu0
        %v1818 = vadd.f32 %v1272, %v1817
        %v1819 = vpop.f32.mrf.mxu0
        %v1820 = vadd.f32 %v1272, %v1819
        %v1821 = vpop.f32.mrf.mxu0
        %v1822 = vadd.f32 %v1277, %v1821
        %v1823 = vpop.f32.mrf.mxu0
        %v1824 = vadd.f32 %v1277, %v1823
        %1825 = vmatprep.mubr.bf16.mxu0 0
        %1826 = vmatmul.mubr.bf16.gmra.mxu0 %v1304
        %v1827 = vpop.f32.mrf.mxu0
        %v1828 = vadd.f32 %v1282, %v1827
        %v1829 = vpop.f32.mrf.mxu0
        %v1830 = vadd.f32 %v1282, %v1829
        %v1831 = vpop.f32.mrf.mxu0
        %v1832 = vadd.f32 %v1287, %v1831
        %v1833 = vpop.f32.mrf.mxu0
        %v1834 = vadd.f32 %v1287, %v1833
        %1835 = vdwg.mxu0
        %1836 = vmatprep.subr.bf16.mxu0 0
        %1837 = vmatpush1.bf16.msra.mxu0 0
        %1838 = vmatprep.subr.bf16.mxu0 0
        %1839 = vmatpush1.bf16.msra.mxu0 0
        %1840 = vmatprep.subr.bf16.mxu0 0
        %1841 = vmatpush1.bf16.msra.mxu0 0
        %1842 = vmatprep.subr.bf16.mxu0 0
        %1843 = vmatpush1.bf16.msra.mxu0 0
        %1844 = vmatprep.subr.bf16.mxu0 0
        %1845 = vmatpush1.bf16.msra.mxu0 0
        %1846 = vmatprep.subr.bf16.mxu0 0
        %1847 = vmatpush1.bf16.msra.mxu0 0
        %1848 = vmatprep.subr.bf16.mxu0 0
        %1849 = vmatpush1.bf16.msra.mxu0 0
        %1850 = vmatprep.subr.bf16.mxu0 %v1250
        %1851 = vmatpush1.bf16.msra.mxu0 %v1249
        %1852 = vmatprep.subr.bf16.mxu0 0
        %1853 = vmatpush2.bf16.msra.mxu0 0
        %1854 = vmatprep.subr.bf16.mxu0 0
        %1855 = vmatpush2.bf16.msra.mxu0 0
        %1856 = vmatprep.subr.bf16.mxu0 0
        %1857 = vmatpush2.bf16.msra.mxu0 0
        %1858 = vmatprep.subr.bf16.mxu0 0
        %1859 = vmatpush2.bf16.msra.mxu0 0
        %1860 = vmatprep.subr.bf16.mxu0 0
        %1861 = vmatpush2.bf16.msra.mxu0 0
        %1862 = vmatprep.subr.bf16.mxu0 0
        %1863 = vmatpush2.bf16.msra.mxu0 0
        %1864 = vmatprep.subr.bf16.mxu0 0
        %1865 = vmatpush2.bf16.msra.mxu0 0
        %1866 = vmatprep.subr.bf16.mxu0 0
        %1867 = vmatpush2.bf16.msra.mxu0 0
        %1868 = vmatprep.mubr.bf16.mxu0 0
        %1869 = vmatmul.mubr.bf16.gmra.mxu0 %v1301
        %v1870 = vpop.f32.mrf.mxu0
        %v1871 = vadd.f32 %v1272, %v1870
        %v1872 = vpop.f32.mrf.mxu0
        %v1873 = vadd.f32 %v1272, %v1872
        %v1874 = vpop.f32.mrf.mxu0
        %v1875 = vadd.f32 %v1277, %v1874
        %v1876 = vpop.f32.mrf.mxu0
        %v1877 = vadd.f32 %v1277, %v1876
        %1878 = vmatprep.mubr.bf16.mxu0 0
        %1879 = vmatmul.mubr.bf16.gmra.mxu0 %v1304
        %v1880 = vpop.f32.mrf.mxu0
        %v1881 = vadd.f32 %v1282, %v1880
        %v1882 = vpop.f32.mrf.mxu0
        %v1883 = vadd.f32 %v1282, %v1882
        %v1884 = vpop.f32.mrf.mxu0
        %v1885 = vadd.f32 %v1287, %v1884
        %v1886 = vpop.f32.mrf.mxu0
        %v1887 = vadd.f32 %v1287, %v1886
        %1888 = vdwg.mxu0
        %1889 = vmatprep.subr.bf16.mxu0 0
        %1890 = vmatpush1.bf16.msra.mxu0 0
        %1891 = vmatprep.subr.bf16.mxu0 0
        %1892 = vmatpush1.bf16.msra.mxu0 0
        %1893 = vmatprep.subr.bf16.mxu0 0
        %1894 = vmatpush1.bf16.msra.mxu0 0
        %1895 = vmatprep.subr.bf16.mxu0 0
        %1896 = vmatpush1.bf16.msra.mxu0 0
        %1897 = vmatprep.subr.bf16.mxu0 0
        %1898 = vmatpush1.bf16.msra.mxu0 0
        %1899 = vmatprep.subr.bf16.mxu0 0
        %1900 = vmatpush1.bf16.msra.mxu0 0
        %1901 = vmatprep.subr.bf16.mxu0 0
        %1902 = vmatpush1.bf16.msra.mxu0 0
        %1903 = vmatprep.subr.bf16.mxu0 %v1252
        %1904 = vmatpush1.bf16.msra.mxu0 %v1251
        %1905 = vmatprep.subr.bf16.mxu0 0
        %1906 = vmatpush2.bf16.msra.mxu0 0
        %1907 = vmatprep.subr.bf16.mxu0 0
        %1908 = vmatpush2.bf16.msra.mxu0 0
        %1909 = vmatprep.subr.bf16.mxu0 0
        %1910 = vmatpush2.bf16.msra.mxu0 0
        %1911 = vmatprep.subr.bf16.mxu0 0
        %1912 = vmatpush2.bf16.msra.mxu0 0
        %1913 = vmatprep.subr.bf16.mxu0 0
        %1914 = vmatpush2.bf16.msra.mxu0 0
        %1915 = vmatprep.subr.bf16.mxu0 0
        %1916 = vmatpush2.bf16.msra.mxu0 0
        %1917 = vmatprep.subr.bf16.mxu0 0
        %1918 = vmatpush2.bf16.msra.mxu0 0
        %1919 = vmatprep.subr.bf16.mxu0 0
        %1920 = vmatpush2.bf16.msra.mxu0 0
        %1921 = vmatprep.mubr.bf16.mxu0 0
        %1922 = vmatmul.mubr.bf16.gmra.mxu0 %v1301
        %v1923 = vpop.f32.mrf.mxu0
        %v1924 = vadd.f32 %v1272, %v1923
        %v1925 = vpop.f32.mrf.mxu0
        %v1926 = vadd.f32 %v1272, %v1925
        %v1927 = vpop.f32.mrf.mxu0
        %v1928 = vadd.f32 %v1277, %v1927
        %v1929 = vpop.f32.mrf.mxu0
        %v1930 = vadd.f32 %v1277, %v1929
        %1931 = vmatprep.mubr.bf16.mxu0 0
        %1932 = vmatmul.mubr.bf16.gmra.mxu0 %v1304
        %v1933 = vpop.f32.mrf.mxu0
        %v1934 = vadd.f32 %v1282, %v1933
        %v1935 = vpop.f32.mrf.mxu0
        %v1936 = vadd.f32 %v1282, %v1935
        %v1937 = vpop.f32.mrf.mxu0
        %v1938 = vadd.f32 %v1287, %v1937
        %v1939 = vpop.f32.mrf.mxu0
        %v1940 = vadd.f32 %v1287, %v1939
        %1941 = vdwg.mxu0
        %1942 = vmatprep.subr.bf16.mxu0 0
        %1943 = vmatpush1.bf16.msra.mxu0 0
        %1944 = vmatprep.subr.bf16.mxu0 0
        %1945 = vmatpush1.bf16.msra.mxu0 0
        %1946 = vmatprep.subr.bf16.mxu0 0
        %1947 = vmatpush1.bf16.msra.mxu0 0
        %1948 = vmatprep.subr.bf16.mxu0 0
        %1949 = vmatpush1.bf16.msra.mxu0 0
        %1950 = vmatprep.subr.bf16.mxu0 0
        %1951 = vmatpush1.bf16.msra.mxu0 0
        %1952 = vmatprep.subr.bf16.mxu0 0
        %1953 = vmatpush1.bf16.msra.mxu0 0
        %1954 = vmatprep.subr.bf16.mxu0 0
        %1955 = vmatpush1.bf16.msra.mxu0 0
        %1956 = vmatprep.subr.bf16.mxu0 %v1254
        %1957 = vmatpush1.bf16.msra.mxu0 %v1253
        %1958 = vmatprep.subr.bf16.mxu0 0
        %1959 = vmatpush2.bf16.msra.mxu0 0
        %1960 = vmatprep.subr.bf16.mxu0 0
        %1961 = vmatpush2.bf16.msra.mxu0 0
        %1962 = vmatprep.subr.bf16.mxu0 0
        %1963 = vmatpush2.bf16.msra.mxu0 0
        %1964 = vmatprep.subr.bf16.mxu0 0
        %1965 = vmatpush2.bf16.msra.mxu0 0
        %1966 = vmatprep.subr.bf16.mxu0 0
        %1967 = vmatpush2.bf16.msra.mxu0 0
        %1968 = vmatprep.subr.bf16.mxu0 0
        %1969 = vmatpush2.bf16.msra.mxu0 0
        %1970 = vmatprep.subr.bf16.mxu0 0
        %1971 = vmatpush2.bf16.msra.mxu0 0
        %1972 = vmatprep.subr.bf16.mxu0 0
        %1973 = vmatpush2.bf16.msra.mxu0 0
        %1974 = vmatprep.mubr.bf16.mxu0 0
        %1975 = vmatmul.mubr.bf16.gmra.mxu0 %v1301
        %v1976 = vpop.f32.mrf.mxu0
        %v1977 = vadd.f32 %v1272, %v1976
        %v1978 = vpop.f32.mrf.mxu0
        %v1979 = vadd.f32 %v1272, %v1978
        %v1980 = vpop.f32.mrf.mxu0
        %v1981 = vadd.f32 %v1277, %v1980
        %v1982 = vpop.f32.mrf.mxu0
        %v1983 = vadd.f32 %v1277, %v1982
        %1984 = vmatprep.mubr.bf16.mxu0 0
        %1985 = vmatmul.mubr.bf16.gmra.mxu0 %v1304
        %v1986 = vpop.f32.mrf.mxu0
        %v1987 = vadd.f32 %v1282, %v1986
        %v1988 = vpop.f32.mrf.mxu0
        %v1989 = vadd.f32 %v1282, %v1988
        %v1990 = vpop.f32.mrf.mxu0
        %v1991 = vadd.f32 %v1287, %v1990
        %v1992 = vpop.f32.mrf.mxu0
        %v1993 = vadd.f32 %v1287, %v1992
        %1994 = vdwg.mxu0
        %1995 = vmatprep.subr.bf16.mxu0 0
        %1996 = vmatpush1.bf16.msra.mxu0 0
        %1997 = vmatprep.subr.bf16.mxu0 0
        %1998 = vmatpush1.bf16.msra.mxu0 0
        %1999 = vmatprep.subr.bf16.mxu0 0
        %2000 = vmatpush1.bf16.msra.mxu0 0
        %2001 = vmatprep.subr.bf16.mxu0 0
        %2002 = vmatpush1.bf16.msra.mxu0 0
        %2003 = vmatprep.subr.bf16.mxu0 0
        %2004 = vmatpush1.bf16.msra.mxu0 0
        %2005 = vmatprep.subr.bf16.mxu0 0
        %2006 = vmatpush1.bf16.msra.mxu0 0
        %2007 = vmatprep.subr.bf16.mxu0 0
        %2008 = vmatpush1.bf16.msra.mxu0 0
        %2009 = vmatprep.subr.bf16.mxu0 %v1256
        %2010 = vmatpush1.bf16.msra.mxu0 %v1255
        %2011 = vmatprep.subr.bf16.mxu0 0
        %2012 = vmatpush2.bf16.msra.mxu0 0
        %2013 = vmatprep.subr.bf16.mxu0 0
        %2014 = vmatpush2.bf16.msra.mxu0 0
        %2015 = vmatprep.subr.bf16.mxu0 0
        %2016 = vmatpush2.bf16.msra.mxu0 0
        %2017 = vmatprep.subr.bf16.mxu0 0
        %2018 = vmatpush2.bf16.msra.mxu0 0
        %2019 = vmatprep.subr.bf16.mxu0 0
        %2020 = vmatpush2.bf16.msra.mxu0 0
        %2021 = vmatprep.subr.bf16.mxu0 0
        %2022 = vmatpush2.bf16.msra.mxu0 0
        %2023 = vmatprep.subr.bf16.mxu0 0
        %2024 = vmatpush2.bf16.msra.mxu0 0
        %2025 = vmatprep.subr.bf16.mxu0 0
        %2026 = vmatpush2.bf16.msra.mxu0 0
        %2027 = vmatprep.mubr.bf16.mxu0 0
        %2028 = vmatmul.mubr.bf16.gmra.mxu0 %v1301
        %v2029 = vpop.f32.mrf.mxu0
        %v2030 = vadd.f32 %v1272, %v2029
        %v2031 = vpop.f32.mrf.mxu0
        %v2032 = vadd.f32 %v1272, %v2031
        %v2033 = vpop.f32.mrf.mxu0
        %v2034 = vadd.f32 %v1277, %v2033
        %v2035 = vpop.f32.mrf.mxu0
        %v2036 = vadd.f32 %v1277, %v2035
        %2037 = vmatprep.mubr.bf16.mxu0 0
        %2038 = vmatmul.mubr.bf16.gmra.mxu0 %v1304
        %v2039 = vpop.f32.mrf.mxu0
        %v2040 = vadd.f32 %v1282, %v2039
        %v2041 = vpop.f32.mrf.mxu0
        %v2042 = vadd.f32 %v1282, %v2041
        %v2043 = vpop.f32.mrf.mxu0
        %v2044 = vadd.f32 %v1287, %v2043
        %v2045 = vpop.f32.mrf.mxu0
        %v2046 = vadd.f32 %v1287, %v2045
        %2047 = vdwg.mxu0
        %2048 = vmatprep.subr.bf16.mxu0 0
        %2049 = vmatpush1.bf16.msra.mxu0 0
        %2050 = vmatprep.subr.bf16.mxu0 0
        %2051 = vmatpush1.bf16.msra.mxu0 0
        %2052 = vmatprep.subr.bf16.mxu0 0
        %2053 = vmatpush1.bf16.msra.mxu0 0
        %2054 = vmatprep.subr.bf16.mxu0 0
        %2055 = vmatpush1.bf16.msra.mxu0 0
        %2056 = vmatprep.subr.bf16.mxu0 0
        %2057 = vmatpush1.bf16.msra.mxu0 0
        %2058 = vmatprep.subr.bf16.mxu0 0
        %2059 = vmatpush1.bf16.msra.mxu0 0
        %2060 = vmatprep.subr.bf16.mxu0 0
        %2061 = vmatpush1.bf16.msra.mxu0 0
        %2062 = vmatprep.subr.bf16.mxu0 %v1258
        %2063 = vmatpush1.bf16.msra.mxu0 %v1257
        %2064 = vmatprep.subr.bf16.mxu0 0
        %2065 = vmatpush2.bf16.msra.mxu0 0
        %2066 = vmatprep.subr.bf16.mxu0 0
        %2067 = vmatpush2.bf16.msra.mxu0 0
        %2068 = vmatprep.subr.bf16.mxu0 0
        %2069 = vmatpush2.bf16.msra.mxu0 0
        %2070 = vmatprep.subr.bf16.mxu0 0
        %2071 = vmatpush2.bf16.msra.mxu0 0
        %2072 = vmatprep.subr.bf16.mxu0 0
        %2073 = vmatpush2.bf16.msra.mxu0 0
        %2074 = vmatprep.subr.bf16.mxu0 0
        %2075 = vmatpush2.bf16.msra.mxu0 0
        %2076 = vmatprep.subr.bf16.mxu0 0
        %2077 = vmatpush2.bf16.msra.mxu0 0
        %2078 = vmatprep.subr.bf16.mxu0 0
        %2079 = vmatpush2.bf16.msra.mxu0 0
        %2080 = vmatprep.mubr.bf16.mxu0 0
        %2081 = vmatmul.mubr.bf16.gmra.mxu0 %v1301
        %v2082 = vpop.f32.mrf.mxu0
        %v2083 = vadd.f32 %v1272, %v2082
        %v2084 = vpop.f32.mrf.mxu0
        %v2085 = vadd.f32 %v1272, %v2084
        %v2086 = vpop.f32.mrf.mxu0
        %v2087 = vadd.f32 %v1277, %v2086
        %v2088 = vpop.f32.mrf.mxu0
        %v2089 = vadd.f32 %v1277, %v2088
        %2090 = vmatprep.mubr.bf16.mxu0 0
        %2091 = vmatmul.mubr.bf16.gmra.mxu0 %v1304
        %v2092 = vpop.f32.mrf.mxu0
        %v2093 = vadd.f32 %v1282, %v2092
        %v2094 = vpop.f32.mrf.mxu0
        %v2095 = vadd.f32 %v1282, %v2094
        %v2096 = vpop.f32.mrf.mxu0
        %v2097 = vadd.f32 %v1287, %v2096
        %v2098 = vpop.f32.mrf.mxu0
        %v2099 = vadd.f32 %v1287, %v2098
        %2100 = vdwg.mxu0
        %2101 = vmatprep.subr.bf16.mxu0 0
        %2102 = vmatpush1.bf16.msra.mxu0 0
        %2103 = vmatprep.subr.bf16.mxu0 0
        %2104 = vmatpush1.bf16.msra.mxu0 0
        %2105 = vmatprep.subr.bf16.mxu0 0
        %2106 = vmatpush1.bf16.msra.mxu0 0
        %2107 = vmatprep.subr.bf16.mxu0 0
        %2108 = vmatpush1.bf16.msra.mxu0 0
        %2109 = vmatprep.subr.bf16.mxu0 0
        %2110 = vmatpush1.bf16.msra.mxu0 0
        %2111 = vmatprep.subr.bf16.mxu0 0
        %2112 = vmatpush1.bf16.msra.mxu0 0
        %2113 = vmatprep.subr.bf16.mxu0 0
        %2114 = vmatpush1.bf16.msra.mxu0 0
        %2115 = vmatprep.subr.bf16.mxu0 %v1260
        %2116 = vmatpush1.bf16.msra.mxu0 %v1259
        %2117 = vmatprep.subr.bf16.mxu0 0
        %2118 = vmatpush2.bf16.msra.mxu0 0
        %2119 = vmatprep.subr.bf16.mxu0 0
        %2120 = vmatpush2.bf16.msra.mxu0 0
        %2121 = vmatprep.subr.bf16.mxu0 0
        %2122 = vmatpush2.bf16.msra.mxu0 0
        %2123 = vmatprep.subr.bf16.mxu0 0
        %2124 = vmatpush2.bf16.msra.mxu0 0
        %2125 = vmatprep.subr.bf16.mxu0 0
        %2126 = vmatpush2.bf16.msra.mxu0 0
        %2127 = vmatprep.subr.bf16.mxu0 0
        %2128 = vmatpush2.bf16.msra.mxu0 0
        %2129 = vmatprep.subr.bf16.mxu0 0
        %2130 = vmatpush2.bf16.msra.mxu0 0
        %2131 = vmatprep.subr.bf16.mxu0 0
        %2132 = vmatpush2.bf16.msra.mxu0 0
        %2133 = vmatprep.mubr.bf16.mxu0 0
        %2134 = vmatmul.mubr.bf16.gmra.mxu0 %v1301
        %v2135 = vpop.f32.mrf.mxu0
        %v2136 = vadd.f32 %v1272, %v2135
        %v2137 = vpop.f32.mrf.mxu0
        %v2138 = vadd.f32 %v1272, %v2137
        %v2139 = vpop.f32.mrf.mxu0
        %v2140 = vadd.f32 %v1277, %v2139
        %v2141 = vpop.f32.mrf.mxu0
        %v2142 = vadd.f32 %v1277, %v2141
        %2143 = vmatprep.mubr.bf16.mxu0 0
        %2144 = vmatmul.mubr.bf16.gmra.mxu0 %v1304
        %v2145 = vpop.f32.mrf.mxu0
        %v2146 = vadd.f32 %v1282, %v2145
        %v2147 = vpop.f32.mrf.mxu0
        %v2148 = vadd.f32 %v1282, %v2147
        %v2149 = vpop.f32.mrf.mxu0
        %v2150 = vadd.f32 %v1287, %v2149
        %v2151 = vpop.f32.mrf.mxu0
        %v2152 = vadd.f32 %v1287, %v2151
        %2153 = vdwg.mxu0
        %v2154 = vmax.f32 %v1341, 0.0
        %v2155 = vmax.f32 %v1343, 0.0
        %v2156 = vmax.f32 %v1394, 0.0
        %v2157 = vmax.f32 %v1396, 0.0
        %v2158 = vmax.f32 %v1447, 0.0
        %v2159 = vmax.f32 %v1449, 0.0
        %v2160 = vmax.f32 %v1500, 0.0
        %v2161 = vmax.f32 %v1502, 0.0
        %v2162 = vmax.f32 %v1553, 0.0
        %v2163 = vmax.f32 %v1555, 0.0
        %v2164 = vmax.f32 %v1606, 0.0
        %v2165 = vmax.f32 %v1608, 0.0
        %v2166 = vmax.f32 %v1659, 0.0
        %v2167 = vmax.f32 %v1661, 0.0
        %v2168 = vmax.f32 %v1712, 0.0
        %v2169 = vmax.f32 %v1714, 0.0
        %v2170 = vmax.f32 %v1765, 0.0
        %v2171 = vmax.f32 %v1767, 0.0
        %v2172 = vmax.f32 %v1818, 0.0
        %v2173 = vmax.f32 %v1820, 0.0
        %v2174 = vmax.f32 %v1871, 0.0
        %v2175 = vmax.f32 %v1873, 0.0
        %v2176 = vmax.f32 %v1924, 0.0
        %v2177 = vmax.f32 %v1926, 0.0
        %v2178 = vmax.f32 %v1977, 0.0
        %v2179 = vmax.f32 %v1979, 0.0
        %v2180 = vmax.f32 %v2030, 0.0
        %v2181 = vmax.f32 %v2032, 0.0
        %v2182 = vmax.f32 %v2083, 0.0
        %v2183 = vmax.f32 %v2085, 0.0
        %v2184 = vmax.f32 %v2136, 0.0
        %v2185 = vmax.f32 %v2138, 0.0
        %v2186 = vmax.f32 %v1345, 0.0
        %v2187 = vmax.f32 %v1347, 0.0
        %v2188 = vmax.f32 %v1398, 0.0
        %v2189 = vmax.f32 %v1400, 0.0
        %v2190 = vmax.f32 %v1451, 0.0
        %v2191 = vmax.f32 %v1453, 0.0
        %v2192 = vmax.f32 %v1504, 0.0
        %v2193 = vmax.f32 %v1506, 0.0
        %v2194 = vmax.f32 %v1557, 0.0
        %v2195 = vmax.f32 %v1559, 0.0
        %v2196 = vmax.f32 %v1610, 0.0
        %v2197 = vmax.f32 %v1612, 0.0
        %v2198 = vmax.f32 %v1663, 0.0
        %v2199 = vmax.f32 %v1665, 0.0
        %v2200 = vmax.f32 %v1716, 0.0
        %v2201 = vmax.f32 %v1718, 0.0
        %v2202 = vmax.f32 %v1769, 0.0
        %v2203 = vmax.f32 %v1771, 0.0
        %v2204 = vmax.f32 %v1822, 0.0
        %v2205 = vmax.f32 %v1824, 0.0
        %v2206 = vmax.f32 %v1875, 0.0
        %v2207 = vmax.f32 %v1877, 0.0
        %v2208 = vmax.f32 %v1928, 0.0
        %v2209 = vmax.f32 %v1930, 0.0
        %v2210 = vmax.f32 %v1981, 0.0
        %v2211 = vmax.f32 %v1983, 0.0
        %v2212 = vmax.f32 %v2034, 0.0
        %v2213 = vmax.f32 %v2036, 0.0
        %v2214 = vmax.f32 %v2087, 0.0
        %v2215 = vmax.f32 %v2089, 0.0
        %v2216 = vmax.f32 %v2140, 0.0
        %v2217 = vmax.f32 %v2142, 0.0
        %v2218 = vmax.f32 %v1351, 0.0
        %v2219 = vmax.f32 %v1353, 0.0
        %v2220 = vmax.f32 %v1404, 0.0
        %v2221 = vmax.f32 %v1406, 0.0
        %v2222 = vmax.f32 %v1457, 0.0
        %v2223 = vmax.f32 %v1459, 0.0
        %v2224 = vmax.f32 %v1510, 0.0
        %v2225 = vmax.f32 %v1512, 0.0
        %v2226 = vmax.f32 %v1563, 0.0
        %v2227 = vmax.f32 %v1565, 0.0
        %v2228 = vmax.f32 %v1616, 0.0
        %v2229 = vmax.f32 %v1618, 0.0
        %v2230 = vmax.f32 %v1669, 0.0
        %v2231 = vmax.f32 %v1671, 0.0
        %v2232 = vmax.f32 %v1722, 0.0
        %v2233 = vmax.f32 %v1724, 0.0
        %v2234 = vmax.f32 %v1775, 0.0
        %v2235 = vmax.f32 %v1777, 0.0
        %v2236 = vmax.f32 %v1828, 0.0
        %v2237 = vmax.f32 %v1830, 0.0
        %v2238 = vmax.f32 %v1881, 0.0
        %v2239 = vmax.f32 %v1883, 0.0
        %v2240 = vmax.f32 %v1934, 0.0
        %v2241 = vmax.f32 %v1936, 0.0
        %v2242 = vmax.f32 %v1987, 0.0
        %v2243 = vmax.f32 %v1989, 0.0
        %v2244 = vmax.f32 %v2040, 0.0
        %v2245 = vmax.f32 %v2042, 0.0
        %v2246 = vmax.f32 %v2093, 0.0
        %v2247 = vmax.f32 %v2095, 0.0
        %v2248 = vmax.f32 %v2146, 0.0
        %v2249 = vmax.f32 %v2148, 0.0
        %v2250 = vmax.f32 %v1355, 0.0
        %v2251 = vmax.f32 %v1357, 0.0
        %v2252 = vmax.f32 %v1408, 0.0
        %v2253 = vmax.f32 %v1410, 0.0
        %v2254 = vmax.f32 %v1461, 0.0
        %v2255 = vmax.f32 %v1463, 0.0
        %v2256 = vmax.f32 %v1514, 0.0
        %v2257 = vmax.f32 %v1516, 0.0
        %v2258 = vmax.f32 %v1567, 0.0
        %v2259 = vmax.f32 %v1569, 0.0
        %v2260 = vmax.f32 %v1620, 0.0
        %v2261 = vmax.f32 %v1622, 0.0
        %v2262 = vmax.f32 %v1673, 0.0
        %v2263 = vmax.f32 %v1675, 0.0
        %v2264 = vmax.f32 %v1726, 0.0
        %v2265 = vmax.f32 %v1728, 0.0
        %v2266 = vmax.f32 %v1779, 0.0
        %v2267 = vmax.f32 %v1781, 0.0
        %v2268 = vmax.f32 %v1832, 0.0
        %v2269 = vmax.f32 %v1834, 0.0
        %v2270 = vmax.f32 %v1885, 0.0
        %v2271 = vmax.f32 %v1887, 0.0
        %v2272 = vmax.f32 %v1938, 0.0
        %v2273 = vmax.f32 %v1940, 0.0
        %v2274 = vmax.f32 %v1991, 0.0
        %v2275 = vmax.f32 %v1993, 0.0
        %v2276 = vmax.f32 %v2044, 0.0
        %v2277 = vmax.f32 %v2046, 0.0
        %v2278 = vmax.f32 %v2097, 0.0
        %v2279 = vmax.f32 %v2099, 0.0
        %v2280 = vmax.f32 %v2150, 0.0
        %v2281 = vmax.f32 %v2152, 0.0
        %v2282 = vmax.f32 %v2154, %v2158
        %v2283 = vmax.f32 %v2155, %v2159
        %v2284 = vmax.f32 %v2156, %v2160
        %v2285 = vmax.f32 %v2157, %v2161
        %v2286 = vmax.f32 %v2186, %v2190
        %v2287 = vmax.f32 %v2187, %v2191
        %v2288 = vmax.f32 %v2188, %v2192
        %v2289 = vmax.f32 %v2189, %v2193
        %v2290 = vmax.f32 %v2218, %v2222
        %v2291 = vmax.f32 %v2219, %v2223
        %v2292 = vmax.f32 %v2220, %v2224
        %v2293 = vmax.f32 %v2221, %v2225
        %v2294 = vmax.f32 %v2250, %v2254
        %v2295 = vmax.f32 %v2251, %v2255
        %v2296 = vmax.f32 %v2252, %v2256
        %v2297 = vmax.f32 %v2253, %v2257
        %v2298 = vmax.f32 %v2282, %v2162
        %v2299 = vmax.f32 %v2283, %v2163
        %v2300 = vmax.f32 %v2284, %v2164
        %v2301 = vmax.f32 %v2285, %v2165
        %v2302 = vmax.f32 %v2286, %v2194
        %v2303 = vmax.f32 %v2287, %v2195
        %v2304 = vmax.f32 %v2288, %v2196
        %v2305 = vmax.f32 %v2289, %v2197
        %v2306 = vmax.f32 %v2290, %v2226
        %v2307 = vmax.f32 %v2291, %v2227
        %v2308 = vmax.f32 %v2292, %v2228
        %v2309 = vmax.f32 %v2293, %v2229
        %v2310 = vmax.f32 %v2294, %v2258
        %v2311 = vmax.f32 %v2295, %v2259
        %v2312 = vmax.f32 %v2296, %v2260
        %v2313 = vmax.f32 %v2297, %v2261
        %v2314 = vmax.f32 %v2298, %v2166
        %v2315 = vmax.f32 %v2299, %v2167
        %v2316 = vmax.f32 %v2300, %v2168
        %v2317 = vmax.f32 %v2301, %v2169
        %v2318 = vmax.f32 %v2302, %v2198
        %v2319 = vmax.f32 %v2303, %v2199
        %v2320 = vmax.f32 %v2304, %v2200
        %v2321 = vmax.f32 %v2305, %v2201
        %v2322 = vmax.f32 %v2306, %v2230
        %v2323 = vmax.f32 %v2307, %v2231
        %v2324 = vmax.f32 %v2308, %v2232
        %v2325 = vmax.f32 %v2309, %v2233
        %v2326 = vmax.f32 %v2310, %v2262
        %v2327 = vmax.f32 %v2311, %v2263
        %v2328 = vmax.f32 %v2312, %v2264
        %v2329 = vmax.f32 %v2313, %v2265
        %v2330 = vmax.f32 %v2314, %v2170
        %v2331 = vmax.f32 %v2315, %v2171
        %v2332 = vmax.f32 %v2316, %v2172
        %v2333 = vmax.f32 %v2317, %v2173
        %v2334 = vmax.f32 %v2318, %v2202
        %v2335 = vmax.f32 %v2319, %v2203
        %v2336 = vmax.f32 %v2320, %v2204
        %v2337 = vmax.f32 %v2321, %v2205
        %v2338 = vmax.f32 %v2322, %v2234
        %v2339 = vmax.f32 %v2323, %v2235
        %v2340 = vmax.f32 %v2324, %v2236
        %v2341 = vmax.f32 %v2325, %v2237
        %v2342 = vmax.f32 %v2326, %v2266
        %v2343 = vmax.f32 %v2327, %v2267
        %v2344 = vmax.f32 %v2328, %v2268
        %v2345 = vmax.f32 %v2329, %v2269
        %v2346 = vmax.f32 %v2330, %v2174
        %v2347 = vmax.f32 %v2331, %v2175
        %v2348 = vmax.f32 %v2332, %v2176
        %v2349 = vmax.f32 %v2333, %v2177
        %v2350 = vmax.f32 %v2334, %v2206
        %v2351 = vmax.f32 %v2335, %v2207
        %v2352 = vmax.f32 %v2336, %v2208
        %v2353 = vmax.f32 %v2337, %v2209
        %v2354 = vmax.f32 %v2338, %v2238
        %v2355 = vmax.f32 %v2339, %v2239
        %v2356 = vmax.f32 %v2340, %v2240
        %v2357 = vmax.f32 %v2341, %v2241
        %v2358 = vmax.f32 %v2342, %v2270
        %v2359 = vmax.f32 %v2343, %v2271
        %v2360 = vmax.f32 %v2344, %v2272
        %v2361 = vmax.f32 %v2345, %v2273
        %v2362 = vmax.f32 %v2346, %v2178
        %v2363 = vmax.f32 %v2347, %v2179
        %v2364 = vmax.f32 %v2348, %v2180
        %v2365 = vmax.f32 %v2349, %v2181
        %v2366 = vmax.f32 %v2350, %v2210
        %v2367 = vmax.f32 %v2351, %v2211
        %v2368 = vmax.f32 %v2352, %v2212
        %v2369 = vmax.f32 %v2353, %v2213
        %v2370 = vmax.f32 %v2354, %v2242
        %v2371 = vmax.f32 %v2355, %v2243
        %v2372 = vmax.f32 %v2356, %v2244
        %v2373 = vmax.f32 %v2357, %v2245
        %v2374 = vmax.f32 %v2358, %v2274
        %v2375 = vmax.f32 %v2359, %v2275
        %v2376 = vmax.f32 %v2360, %v2276
        %v2377 = vmax.f32 %v2361, %v2277
        %v2378 = vmax.f32 %v2362, %v2182
        %v2379 = vmax.f32 %v2363, %v2183
        %v2380 = vmax.f32 %v2364, %v2184
        %v2381 = vmax.f32 %v2365, %v2185
        %v2382 = vmax.f32 %v2366, %v2214
        %v2383 = vmax.f32 %v2367, %v2215
        %v2384 = vmax.f32 %v2368, %v2216
        %v2385 = vmax.f32 %v2369, %v2217
        %v2386 = vmax.f32 %v2370, %v2246
        %v2387 = vmax.f32 %v2371, %v2247
        %v2388 = vmax.f32 %v2372, %v2248
        %v2389 = vmax.f32 %v2373, %v2249
        %v2390 = vmax.f32 %v2374, %v2278
        %v2391 = vmax.f32 %v2375, %v2279
        %v2392 = vmax.f32 %v2376, %v2280
        %v2393 = vmax.f32 %v2377, %v2281
        %2394 = vst [vmem:[%s258] sm:$0xff] %v2378
        %2395 = vst [vmem:[%s258 + $0x8] sm:$0xff] %v2379
        %2396 = vst [vmem:[%s258 + $0x10] sm:$0xff] %v2380
        %2397 = vst [vmem:[%s258 + $0x18] sm:$0xff] %v2381
        %2398 = vst [vmem:[%s258 + $0x20] sm:$0xff] %v2382
        %2399 = vst [vmem:[%s258 + $0x28] sm:$0xff] %v2383
        %2400 = vst [vmem:[%s258 + $0x30] sm:$0xff] %v2384
        %2401 = vst [vmem:[%s258 + $0x38] sm:$0xff] %v2385
        %2402 = vst [vmem:[%s258 + $0x40] sm:$0xff] %v2386
        %2403 = vst [vmem:[%s258 + $0x48] sm:$0xff] %v2387
        %2404 = vst [vmem:[%s258 + $0x50] sm:$0xff] %v2388
        %2405 = vst [vmem:[%s258 + $0x58] sm:$0xff] %v2389
        %2406 = vst [vmem:[%s258 + $0x60] sm:$0xff] %v2390
        %2407 = vst [vmem:[%s258 + $0x68] sm:$0xff] %v2391
        %2408 = vst [vmem:[%s258 + $0x70] sm:$0xff] %v2392
        %2409 = vst [vmem:[%s258 + $0x78] sm:$0xff] %v2393
        %s2410 = sand.u32 %s156, 1
        %s2411 = scalar_lea.sflag [#allocation4], %s2410
        %s2412 = sand.u32 %s156, 1
        %s2413 = smul.addr %s2412, 128
        %s2414 = scalar_lea.vmem [#allocation5], %s2413
        // Predicated region
        $region45: #{tpu_custom_call.1} parent=39 // pred_check
          %p2415 = pneg %p166
        $region46: #{tpu_custom_call.1} parent=39 // pred_check_branch
          %2417 = sbr.rel (%p2415) target = $region48
        $region47: #{tpu_custom_call.1} parent=39 // pred_region
          %s2418 = smul.u32 4, %s27
          %s2420 = ssub.s32 2048, 2048
          %2421 = vsyncadd %s2411, %s2420
          %s2422 = smul.addr %s26, 16
          %s2423 = sadd.s32 %s2418, %s2422
          %s2424 = smul.addr %s2423, 128
          %s2425 = scalar_lea.hbm %s5, %s2424
          %s2426 = sshll.u32 %s2414, 4
          %s2427 = int_to_ptr.vmem [resolvable:$true] %s2426
          %2432 = dma.vmem_to_hbm [thread:$0]  %s2427, 2048, %s2425, %s2411, 512, 512, 32
        $region48: #{tpu_custom_call.1} parent=39 // pred_fallthru
          _
      $region40: #{tpu_custom_call.1} parent=5 // pred_fallthru
        _
      %p2433 = scmp.le.s32.totalorder 2, %s17
      // Predicated region
      $region49: #{tpu_custom_call.1} parent=5 // pred_check
        %p2434 = pneg %p2433
      $region50: #{tpu_custom_call.1} parent=5 // pred_check_branch
        %2436 = sbr.rel (%p2434) target = $region52
      $region51: #{tpu_custom_call.1} parent=5 // pred_region
        %s2437 = ssub.s32 %s17, 2
        // Predicated region
        $region53: #{tpu_custom_call.1} parent=51 // pred_check
          %p2438 = pneg %p172
        $region54: #{tpu_custom_call.1} parent=51 // pred_check_branch
          %2440 = sbr.rel (%p2438) target = $region56
        $region55: #{tpu_custom_call.1} parent=51 // pred_region
          %s2441 = sand.u32 %s157, 1
          %s2442 = scalar_lea.sflag [#allocation4], %s2441
          %s2443 = sand.u32 %s157, 1
          %s2444 = smul.addr %s2443, 128
          %s2445 = scalar_lea.vmem [#allocation5], %s2444
          %2446 = dma.done %s2442, 2048
        $region56: #{tpu_custom_call.1} parent=51 // pred_fallthru
          _
      $region52: #{tpu_custom_call.1} parent=5 // pred_fallthru
        _
    $region6: #{tpu_custom_call.1} parent=1 // loop_footer
      %s21 = sadd.s32 1, %s17
    $region7: #{tpu_custom_call.1} parent=1 // loop_footer_branch
      %16 = sbr.rel target = $region3
    $region8: #{tpu_custom_call.1} parent=1 // loop_exit
      _
    %2447 = vsyncpa [#allocation3], 1
    %s2448 = scalar_lea.sflag [#allocation3], 1
    %2449 = vsyncpa %s2448, 1
    %2450 = vsyncpa [#allocation4], 1
    %s2451 = scalar_lea.sflag [#allocation4], 1
    %2452 = vsyncpa %s2451, 1

</llo_original>
